<compile_context>
chip_gen: v6e
topology: v6e:2x2x1
jax: 0.10.0
libtpu: 0.0.40
codegen_flags: <defaults>
</compile_context>

<pallas_src>
import functools

import jax
import jax.numpy as jnp
from jax.experimental import pallas as pl
from jax.experimental.pallas import tpu as pltpu

_LANE = 128
_SUBLANE = 8


def _round_up(x, m):
    return (x + m - 1) // m * m


def _lstm_fc_kernel(x_ref, wih_ref, whh_ref, b_ref, wfc_ref, bfc_ref,
                    out_ref, xproj_ref, *, seq_len, batch_tile, hidden_pad):
    """One grid step == one batch tile through the full sequence.

    x_ref     : (T*Bt, Ep)   time-major embedded tokens for this batch tile
                             (rows [t*Bt, (t+1)*Bt) are the tile at time t)
    wih_ref   : (Ep, 4*Hp)   W_ih^T, per-gate 128-aligned column blocks
    whh_ref   : (Hp, 4*Hp)   W_hh^T, per-gate 128-aligned column blocks
    b_ref     : (1, 4*Hp)    b_ih + b_hh (padded, per-gate blocks)
    wfc_ref   : (Hp, Cp)     W_fc^T (padded)
    bfc_ref   : (1, Cp)      b_fc (padded)
    out_ref   : (Bt, Cp)     logits for this batch tile (lane-dense)
    xproj_ref : (T*Bt, 4*Hp) scratch: precomputed input projection
    """
    Hp = hidden_pad
    Bt = batch_tile

    # ---- Phase 1 (time-parallel): one big MXU matmul for every time step. ----
    # Bias is folded in here once, not re-added per step.
    xproj_ref[...] = (
        jnp.dot(x_ref[...], wih_ref[...], preferred_element_type=jnp.float32)
        + b_ref[...])

    # Loop-invariant recurrent weights: load once, keep in vregs.
    whh = whh_ref[...]

    # ---- Phase 2 (sequential): the actual recurrence, h/c in registers. ----
    def step(t, carry):
        h, c = carry
        row0 = pl.multiple_of(t * Bt, Bt)
        gates = (xproj_ref[pl.ds(row0, Bt), :]
                 + jnp.dot(h, whh, preferred_element_type=jnp.float32))
        # PyTorch gate order: input, forget, cell(g), output.
        # Hp == 128k so every slice is lane-aligned (free view).
        i_g = jax.nn.sigmoid(gates[:, 0 * Hp:1 * Hp])
        f_g = jax.nn.sigmoid(gates[:, 1 * Hp:2 * Hp])
        g_g = jnp.tanh(gates[:, 2 * Hp:3 * Hp])
        o_g = jax.nn.sigmoid(gates[:, 3 * Hp:4 * Hp])
        c_new = f_g * c + i_g * g_g
        h_new = o_g * jnp.tanh(c_new)
        return h_new, c_new

    h0 = jnp.zeros((Bt, Hp), jnp.float32)
    c0 = jnp.zeros((Bt, Hp), jnp.float32)
    h_final, _ = jax.lax.fori_loop(0, seq_len, step, (h0, c0), unroll=True)

    # ---- Fused FC head on the last hidden state (lane-dense output). ----
    out_ref[...] = (
        jnp.dot(h_final, wfc_ref[...], preferred_element_type=jnp.float32)
        + bfc_ref[...]).astype(out_ref.dtype)


def _pad_gate_weights(w, in_dim_pad, hidden, hidden_pad):
    """w: (4H, in_dim) PyTorch layout -> (in_dim_pad, 4*Hp) transposed, with each
    gate's columns placed at a 128-aligned block so gate slicing is free."""
    H, Hp = hidden, hidden_pad
    in_dim = w.shape[1]
    w_t = jnp.transpose(w).astype(jnp.float32)          # (in_dim, 4H)
    out = jnp.zeros((in_dim_pad, 4 * Hp), jnp.float32)
    for k in range(4):
        out = out.at[:in_dim, k * Hp:k * Hp + H].set(w_t[:, k * H:(k + 1) * H])
    return out


def _pad_gate_bias(b, hidden, hidden_pad):
    H, Hp = hidden, hidden_pad
    out = jnp.zeros((1, 4 * Hp), jnp.float32)
    for k in range(4):
        out = out.at[0, k * Hp:k * Hp + H].set(b[k * H:(k + 1) * H])
    return out


def text_classification_forward(tokens, params):
    """tokens: int32 (B, T).  Returns logits (B, num_classes) float32."""
    emb_table = params["embedding"]          # (V, E)
    w_ih = params["w_ih"]                    # (4H, E)  PyTorch layout
    w_hh = params["w_hh"]                    # (4H, H)
    b_ih = params["b_ih"]                    # (4H,)
    b_hh = params["b_hh"]                    # (4H,)
    w_fc = params["w_fc"]                    # (C, H)
    b_fc = params["b_fc"]                    # (C,)

    B, T = tokens.shape
    E = emb_table.shape[1]
    H = w_hh.shape[1]
    C = w_fc.shape[0]

    # Hardware-aligned padded dims.
    Ep = _round_up(E, _LANE)
    Hp = _round_up(H, _LANE)
    Cp = _round_up(C, _LANE)
    Bp = _round_up(B, _SUBLANE)
    # Batch tile: multiple of 8; gives the grid a "parallel" axis for megacore
    # (v7x 2 TCs) once the batch is large enough.
    Bt = min(Bp, 128)
    Bp = _round_up(Bp, Bt)
    nbt = Bp // Bt

    # ---- Glue: embedding gather + pad + time-major batch-tiled layout. ----
    # TODO(synk): for large B*T*E, fuse the gather/transpose into the kernel
    # (scalar-prefetch token ids + row-gather DMA) to avoid the extra HBM pass.
    x_emb = jnp.take(emb_table.astype(jnp.float32), tokens, axis=0)   # (B, T, E)
    x_pad = jnp.zeros((Bp, T, Ep), jnp.float32).at[:B, :, :E].set(x_emb)
    # (Bp, T, Ep) -> (nbt, Bt, T, Ep) -> (nbt, T, Bt, Ep) -> (nbt, T*Bt, Ep)
    x_tm = jnp.transpose(x_pad.reshape(nbt, Bt, T, Ep),
                         (0, 2, 1, 3)).reshape(nbt, T * Bt, Ep)

    # ---- Padded, per-gate lane-aligned weights. ----
    wih_p = _pad_gate_weights(w_ih, Ep, H, Hp)                     # (Ep, 4Hp)
    whh_p = _pad_gate_weights(w_hh, Hp, H, Hp)                     # (Hp, 4Hp)
    bias_p = _pad_gate_bias((b_ih + b_hh).astype(jnp.float32), H, Hp)   # (1, 4Hp)
    wfc_p = jnp.zeros((Hp, Cp), jnp.float32).at[:H, :C].set(
        jnp.transpose(w_fc).astype(jnp.float32))                   # (Hp, Cp)
    bfc_p = jnp.zeros((1, Cp), jnp.float32).at[0, :C].set(
        b_fc.astype(jnp.float32))                                  # (1, Cp)

    kernel = functools.partial(_lstm_fc_kernel, seq_len=T,
                               batch_tile=Bt, hidden_pad=Hp)

    out_p = pl.pallas_call(
        kernel,
        out_shape=jax.ShapeDtypeStruct((nbt, Bt, Cp), jnp.float32),
        grid_spec=pltpu.PrefetchScalarGridSpec(
            num_scalar_prefetch=0,
            grid=(nbt,),
            in_specs=[
                pl.BlockSpec((None, T * Bt, Ep), lambda b: (b, 0, 0)),  # x tile
                pl.BlockSpec((Ep, 4 * Hp), lambda b: (0, 0)),           # W_ih^T
                pl.BlockSpec((Hp, 4 * Hp), lambda b: (0, 0)),           # W_hh^T
                pl.BlockSpec((1, 4 * Hp), lambda b: (0, 0)),            # bias
                pl.BlockSpec((Hp, Cp), lambda b: (0, 0)),               # W_fc^T
                pl.BlockSpec((1, Cp), lambda b: (0, 0)),                # b_fc
            ],
            out_specs=pl.BlockSpec((None, Bt, Cp), lambda b: (b, 0, 0)),
            scratch_shapes=[
                pltpu.VMEM((T * Bt, 4 * Hp), jnp.float32),   # x projection
            ],
        ),
        compiler_params=pltpu.CompilerParams(
            dimension_semantics=("parallel",),   # batch tiles are independent
        ),
    )(x_tm, wih_p, whh_p, bias_p, wfc_p, bfc_p)

    # Un-pad: (nbt, Bt, Cp) -> (Bp, Cp) -> (B, C)
    return out_p.reshape(Bp, Cp)[:B, :C]


def init_params(key, vocab_size, embed_dim, hidden_dim, num_classes):
    ks = jax.random.split(key, 7)
    scale = 1.0 / jnp.sqrt(hidden_dim)
    return {
        "embedding": jax.random.normal(ks[0], (vocab_size, embed_dim), jnp.float32),
        "w_ih": jax.random.uniform(ks[1], (4 * hidden_dim, embed_dim), jnp.float32,
                                   -scale, scale),
        "w_hh": jax.random.uniform(ks[2], (4 * hidden_dim, hidden_dim), jnp.float32,
                                   -scale, scale),
        "b_ih": jax.random.uniform(ks[3], (4 * hidden_dim,), jnp.float32, -scale, scale),
        "b_hh": jax.random.uniform(ks[4], (4 * hidden_dim,), jnp.float32, -scale, scale),
        "w_fc": jax.random.uniform(ks[5], (num_classes, hidden_dim), jnp.float32,
                                   -scale, scale),
        "b_fc": jax.random.uniform(ks[6], (num_classes,), jnp.float32, -scale, scale),
    }


if __name__ == "__main__":
    vocab_size, embed_dim, hidden_dim, num_classes = 50, 16, 32, 4
    batch, seq = 2, 8

    key = jax.random.PRNGKey(0)
    pkey, tkey = jax.random.split(key)
    params = init_params(pkey, vocab_size, embed_dim, hidden_dim, num_classes)
    tokens = jax.random.randint(tkey, (batch, seq), 0, vocab_size, dtype=jnp.int32)

    logits = text_classification_forward(tokens, params)
    jax.block_until_ready(logits)
    assert logits.shape == (batch, num_classes)
    assert bool(jnp.all(jnp.isfinite(logits)))
    print("KERNEL_OK")
</pallas_src>

<mosaic_0001>
module attributes {stable_mosaic.version = 11 : i64} {
  func.func @_lstm_fc_kernel(%arg0: i32, %arg1: memref<1x64x128xf32, #tpu.memory_space<vmem>>, %arg2: memref<128x512xf32, #tpu.memory_space<vmem>>, %arg3: memref<128x512xf32, #tpu.memory_space<vmem>>, %arg4: memref<1x512xf32, #tpu.memory_space<vmem>>, %arg5: memref<128x128xf32, #tpu.memory_space<vmem>>, %arg6: memref<1x128xf32, #tpu.memory_space<vmem>>, %arg7: memref<1x8x128xf32, #tpu.memory_space<vmem>>, %arg8: memref<64x512xf32, #tpu.memory_space<vmem>>) attributes {dimension_semantics = [#tpu.dimension_semantics<parallel>], iteration_bounds = array<i64: 1>, scalar_prefetch = 0 : i64, scratch_operands = 1 : i64, tpu.core_type = #tpu.core_type<tc>, window_params = [{transform_indices = @transform_0, window_bounds = array<i64: 1, 64, 128>}, {pipeline_mode = #tpu.pipeline_mode<synchronous>, transform_indices = @transform_1, window_bounds = array<i64: 128, 512>}, {pipeline_mode = #tpu.pipeline_mode<synchronous>, transform_indices = @transform_2, window_bounds = array<i64: 128, 512>}, {pipeline_mode = #tpu.pipeline_mode<synchronous>, transform_indices = @transform_3, window_bounds = array<i64: 1, 512>}, {pipeline_mode = #tpu.pipeline_mode<synchronous>, transform_indices = @transform_4, window_bounds = array<i64: 128, 128>}, {pipeline_mode = #tpu.pipeline_mode<synchronous>, transform_indices = @transform_5, window_bounds = array<i64: 1, 128>}, {transform_indices = @transform_6, window_bounds = array<i64: 1, 8, 128>}]} {
    %c0 = arith.constant 0 : index
    %c0_0 = arith.constant 0 : index
    %c0_1 = arith.constant 0 : index
    %0 = vector.load %arg1[%c0, %c0_0, %c0_1] : memref<1x64x128xf32, #tpu.memory_space<vmem>>, vector<1x64x128xf32>
    %1 = vector.shape_cast %0 : vector<1x64x128xf32> to vector<64x128xf32>
    %c0_2 = arith.constant 0 : index
    %c0_3 = arith.constant 0 : index
    %2 = vector.load %arg2[%c0_2, %c0_3] : memref<128x512xf32, #tpu.memory_space<vmem>>, vector<128x512xf32>
    %cst = arith.constant dense<0.000000e+00> : vector<64x512xf32>
    %3 = tpu.matmul %1, %2, %cst {dimension_numbers = #tpu.dot_dimension_numbers<[1], [0], [0], [1], [0, 0, 1, 1], [], []>} : vector<64x128xf32>, vector<128x512xf32>, vector<64x512xf32> -> vector<64x512xf32>
    %c0_4 = arith.constant 0 : index
    %c0_5 = arith.constant 0 : index
    %4 = vector.load %arg4[%c0_4, %c0_5] : memref<1x512xf32, #tpu.memory_space<vmem>>, vector<1x512xf32>
    %5 = vector.broadcast %4 : vector<1x512xf32> to vector<64x512xf32>
    %6 = arith.addf %3, %5 : vector<64x512xf32>
    %c0_6 = arith.constant 0 : index
    %c0_7 = arith.constant 0 : index
    %7 = vector.load %arg8[%c0_6, %c0_7] : memref<64x512xf32, #tpu.memory_space<vmem>>, vector<64x512xf32>
    tpu.vector_store %arg8[%c0_6, %c0_7], %6 {strides = array<i32>} : memref<64x512xf32, #tpu.memory_space<vmem>>, vector<64x512xf32>,
    %c0_8 = arith.constant 0 : index
    %c0_9 = arith.constant 0 : index
    %8 = vector.load %arg3[%c0_8, %c0_9] : memref<128x512xf32, #tpu.memory_space<vmem>>, vector<128x512xf32>
    %cst_10 = arith.constant 0.000000e+00 : f32
    %9 = vector.broadcast %cst_10 : f32 to vector<8x128xf32>
    %cst_11 = arith.constant 0.000000e+00 : f32
    %10 = vector.broadcast %cst_11 : f32 to vector<8x128xf32>
    %c0_i32 = arith.constant 0 : i32
    %c8_i32 = arith.constant 8 : i32
    %11 = arith.muli %c0_i32, %c8_i32 : i32
    %12 = tpu.assume_multiple %11, 8 : i32
    %13 = arith.index_cast %12 : i32 to index
    %c0_12 = arith.constant 0 : index
    %14 = vector.load %arg8[%13, %c0_12] : memref<64x512xf32, #tpu.memory_space<vmem>>, vector<8x512xf32>
    %cst_13 = arith.constant dense<0.000000e+00> : vector<8x512xf32>
    %15 = tpu.matmul %9, %8, %cst_13 {dimension_numbers = #tpu.dot_dimension_numbers<[1], [0], [0], [1], [0, 0, 1, 1], [], []>} : vector<8x128xf32>, vector<128x512xf32>, vector<8x512xf32> -> vector<8x512xf32>
    %16 = arith.addf %14, %15 : vector<8x512xf32>
    %17 = vector.extract_strided_slice %16 {offsets = [0, 0], sizes = [8, 128], strides = [1, 1]} : vector<8x512xf32> to vector<8x128xf32>
    %18 = arith.negf %17 : vector<8x128xf32>
    %19 = math.exp %18 : vector<8x128xf32>
    %cst_14 = arith.constant 1.000000e+00 : f32
    %20 = vector.broadcast %cst_14 : f32 to vector<8x128xf32>
    %21 = arith.addf %20, %19 : vector<8x128xf32>
    %22 = arith.divf %20, %21 : vector<8x128xf32>
    %23 = vector.extract_strided_slice %16 {offsets = [0, 128], sizes = [8, 128], strides = [1, 1]} : vector<8x512xf32> to vector<8x128xf32>
    %24 = arith.negf %23 : vector<8x128xf32>
    %25 = math.exp %24 : vector<8x128xf32>
    %cst_15 = arith.constant 1.000000e+00 : f32
    %26 = vector.broadcast %cst_15 : f32 to vector<8x128xf32>
    %27 = arith.addf %26, %25 : vector<8x128xf32>
    %28 = arith.divf %26, %27 : vector<8x128xf32>
    %29 = vector.extract_strided_slice %16 {offsets = [0, 256], sizes = [8, 128], strides = [1, 1]} : vector<8x512xf32> to vector<8x128xf32>
    %30 = math.tanh %29 : vector<8x128xf32>
    %31 = vector.extract_strided_slice %16 {offsets = [0, 384], sizes = [8, 128], strides = [1, 1]} : vector<8x512xf32> to vector<8x128xf32>
    %32 = arith.negf %31 : vector<8x128xf32>
    %33 = math.exp %32 : vector<8x128xf32>
    %cst_16 = arith.constant 1.000000e+00 : f32
    %34 = vector.broadcast %cst_16 : f32 to vector<8x128xf32>
    %35 = arith.addf %34, %33 : vector<8x128xf32>
    %36 = arith.divf %34, %35 : vector<8x128xf32>
    %37 = arith.mulf %28, %10 : vector<8x128xf32>
    %38 = arith.mulf %22, %30 : vector<8x128xf32>
    %39 = arith.addf %37, %38 : vector<8x128xf32>
    %40 = math.tanh %39 : vector<8x128xf32>
    %41 = arith.mulf %36, %40 : vector<8x128xf32>
    %c1_i32 = arith.constant 1 : i32
    %c8_i32_17 = arith.constant 8 : i32
    %42 = arith.muli %c1_i32, %c8_i32_17 : i32
    %43 = tpu.assume_multiple %42, 8 : i32
    %44 = arith.index_cast %43 : i32 to index
    %c0_18 = arith.constant 0 : index
    %45 = vector.load %arg8[%44, %c0_18] : memref<64x512xf32, #tpu.memory_space<vmem>>, vector<8x512xf32>
    %cst_19 = arith.constant dense<0.000000e+00> : vector<8x512xf32>
    %46 = tpu.matmul %41, %8, %cst_19 {dimension_numbers = #tpu.dot_dimension_numbers<[1], [0], [0], [1], [0, 0, 1, 1], [], []>} : vector<8x128xf32>, vector<128x512xf32>, vector<8x512xf32> -> vector<8x512xf32>
    %47 = arith.addf %45, %46 : vector<8x512xf32>
    %48 = vector.extract_strided_slice %47 {offsets = [0, 0], sizes = [8, 128], strides = [1, 1]} : vector<8x512xf32> to vector<8x128xf32>
    %49 = arith.negf %48 : vector<8x128xf32>
    %50 = math.exp %49 : vector<8x128xf32>
    %cst_20 = arith.constant 1.000000e+00 : f32
    %51 = vector.broadcast %cst_20 : f32 to vector<8x128xf32>
    %52 = arith.addf %51, %50 : vector<8x128xf32>
    %53 = arith.divf %51, %52 : vector<8x128xf32>
    %54 = vector.extract_strided_slice %47 {offsets = [0, 128], sizes = [8, 128], strides = [1, 1]} : vector<8x512xf32> to vector<8x128xf32>
    %55 = arith.negf %54 : vector<8x128xf32>
    %56 = math.exp %55 : vector<8x128xf32>
    %cst_21 = arith.constant 1.000000e+00 : f32
    %57 = vector.broadcast %cst_21 : f32 to vector<8x128xf32>
    %58 = arith.addf %57, %56 : vector<8x128xf32>
    %59 = arith.divf %57, %58 : vector<8x128xf32>
    %60 = vector.extract_strided_slice %47 {offsets = [0, 256], sizes = [8, 128], strides = [1, 1]} : vector<8x512xf32> to vector<8x128xf32>
    %61 = math.tanh %60 : vector<8x128xf32>
    %62 = vector.extract_strided_slice %47 {offsets = [0, 384], sizes = [8, 128], strides = [1, 1]} : vector<8x512xf32> to vector<8x128xf32>
    %63 = arith.negf %62 : vector<8x128xf32>
    %64 = math.exp %63 : vector<8x128xf32>
    %cst_22 = arith.constant 1.000000e+00 : f32
    %65 = vector.broadcast %cst_22 : f32 to vector<8x128xf32>
    %66 = arith.addf %65, %64 : vector<8x128xf32>
    %67 = arith.divf %65, %66 : vector<8x128xf32>
    %68 = arith.mulf %59, %39 : vector<8x128xf32>
    %69 = arith.mulf %53, %61 : vector<8x128xf32>
    %70 = arith.addf %68, %69 : vector<8x128xf32>
    %71 = math.tanh %70 : vector<8x128xf32>
    %72 = arith.mulf %67, %71 : vector<8x128xf32>
    %c2_i32 = arith.constant 2 : i32
    %c8_i32_23 = arith.constant 8 : i32
    %73 = arith.muli %c2_i32, %c8_i32_23 : i32
    %74 = tpu.assume_multiple %73, 8 : i32
    %75 = arith.index_cast %74 : i32 to index
    %c0_24 = arith.constant 0 : index
    %76 = vector.load %arg8[%75, %c0_24] : memref<64x512xf32, #tpu.memory_space<vmem>>, vector<8x512xf32>
    %cst_25 = arith.constant dense<0.000000e+00> : vector<8x512xf32>
    %77 = tpu.matmul %72, %8, %cst_25 {dimension_numbers = #tpu.dot_dimension_numbers<[1], [0], [0], [1], [0, 0, 1, 1], [], []>} : vector<8x128xf32>, vector<128x512xf32>, vector<8x512xf32> -> vector<8x512xf32>
    %78 = arith.addf %76, %77 : vector<8x512xf32>
    %79 = vector.extract_strided_slice %78 {offsets = [0, 0], sizes = [8, 128], strides = [1, 1]} : vector<8x512xf32> to vector<8x128xf32>
    %80 = arith.negf %79 : vector<8x128xf32>
    %81 = math.exp %80 : vector<8x128xf32>
    %cst_26 = arith.constant 1.000000e+00 : f32
    %82 = vector.broadcast %cst_26 : f32 to vector<8x128xf32>
    %83 = arith.addf %82, %81 : vector<8x128xf32>
    %84 = arith.divf %82, %83 : vector<8x128xf32>
    %85 = vector.extract_strided_slice %78 {offsets = [0, 128], sizes = [8, 128], strides = [1, 1]} : vector<8x512xf32> to vector<8x128xf32>
    %86 = arith.negf %85 : vector<8x128xf32>
    %87 = math.exp %86 : vector<8x128xf32>
    %cst_27 = arith.constant 1.000000e+00 : f32
    %88 = vector.broadcast %cst_27 : f32 to vector<8x128xf32>
    %89 = arith.addf %88, %87 : vector<8x128xf32>
    %90 = arith.divf %88, %89 : vector<8x128xf32>
    %91 = vector.extract_strided_slice %78 {offsets = [0, 256], sizes = [8, 128], strides = [1, 1]} : vector<8x512xf32> to vector<8x128xf32>
    %92 = math.tanh %91 : vector<8x128xf32>
    %93 = vector.extract_strided_slice %78 {offsets = [0, 384], sizes = [8, 128], strides = [1, 1]} : vector<8x512xf32> to vector<8x128xf32>
    %94 = arith.negf %93 : vector<8x128xf32>
    %95 = math.exp %94 : vector<8x128xf32>
    %cst_28 = arith.constant 1.000000e+00 : f32
    %96 = vector.broadcast %cst_28 : f32 to vector<8x128xf32>
    %97 = arith.addf %96, %95 : vector<8x128xf32>
    %98 = arith.divf %96, %97 : vector<8x128xf32>
    %99 = arith.mulf %90, %70 : vector<8x128xf32>
    %100 = arith.mulf %84, %92 : vector<8x128xf32>
    %101 = arith.addf %99, %100 : vector<8x128xf32>
    %102 = math.tanh %101 : vector<8x128xf32>
    %103 = arith.mulf %98, %102 : vector<8x128xf32>
    %c3_i32 = arith.constant 3 : i32
    %c8_i32_29 = arith.constant 8 : i32
    %104 = arith.muli %c3_i32, %c8_i32_29 : i32
    %105 = tpu.assume_multiple %104, 8 : i32
    %106 = arith.index_cast %105 : i32 to index
    %c0_30 = arith.constant 0 : index
    %107 = vector.load %arg8[%106, %c0_30] : memref<64x512xf32, #tpu.memory_space<vmem>>, vector<8x512xf32>
    %cst_31 = arith.constant dense<0.000000e+00> : vector<8x512xf32>
    %108 = tpu.matmul %103, %8, %cst_31 {dimension_numbers = #tpu.dot_dimension_numbers<[1], [0], [0], [1], [0, 0, 1, 1], [], []>} : vector<8x128xf32>, vector<128x512xf32>, vector<8x512xf32> -> vector<8x512xf32>
    %109 = arith.addf %107, %108 : vector<8x512xf32>
    %110 = vector.extract_strided_slice %109 {offsets = [0, 0], sizes = [8, 128], strides = [1, 1]} : vector<8x512xf32> to vector<8x128xf32>
    %111 = arith.negf %110 : vector<8x128xf32>
    %112 = math.exp %111 : vector<8x128xf32>
    %cst_32 = arith.constant 1.000000e+00 : f32
    %113 = vector.broadcast %cst_32 : f32 to vector<8x128xf32>
    %114 = arith.addf %113, %112 : vector<8x128xf32>
    %115 = arith.divf %113, %114 : vector<8x128xf32>
    %116 = vector.extract_strided_slice %109 {offsets = [0, 128], sizes = [8, 128], strides = [1, 1]} : vector<8x512xf32> to vector<8x128xf32>
    %117 = arith.negf %116 : vector<8x128xf32>
    %118 = math.exp %117 : vector<8x128xf32>
    %cst_33 = arith.constant 1.000000e+00 : f32
    %119 = vector.broadcast %cst_33 : f32 to vector<8x128xf32>
    %120 = arith.addf %119, %118 : vector<8x128xf32>
    %121 = arith.divf %119, %120 : vector<8x128xf32>
    %122 = vector.extract_strided_slice %109 {offsets = [0, 256], sizes = [8, 128], strides = [1, 1]} : vector<8x512xf32> to vector<8x128xf32>
    %123 = math.tanh %122 : vector<8x128xf32>
    %124 = vector.extract_strided_slice %109 {offsets = [0, 384], sizes = [8, 128], strides = [1, 1]} : vector<8x512xf32> to vector<8x128xf32>
    %125 = arith.negf %124 : vector<8x128xf32>
    %126 = math.exp %125 : vector<8x128xf32>
    %cst_34 = arith.constant 1.000000e+00 : f32
    %127 = vector.broadcast %cst_34 : f32 to vector<8x128xf32>
    %128 = arith.addf %127, %126 : vector<8x128xf32>
    %129 = arith.divf %127, %128 : vector<8x128xf32>
    %130 = arith.mulf %121, %101 : vector<8x128xf32>
    %131 = arith.mulf %115, %123 : vector<8x128xf32>
    %132 = arith.addf %130, %131 : vector<8x128xf32>
    %133 = math.tanh %132 : vector<8x128xf32>
    %134 = arith.mulf %129, %133 : vector<8x128xf32>
    %c4_i32 = arith.constant 4 : i32
    %c8_i32_35 = arith.constant 8 : i32
    %135 = arith.muli %c4_i32, %c8_i32_35 : i32
    %136 = tpu.assume_multiple %135, 8 : i32
    %137 = arith.index_cast %136 : i32 to index
    %c0_36 = arith.constant 0 : index
    %138 = vector.load %arg8[%137, %c0_36] : memref<64x512xf32, #tpu.memory_space<vmem>>, vector<8x512xf32>
    %cst_37 = arith.constant dense<0.000000e+00> : vector<8x512xf32>
    %139 = tpu.matmul %134, %8, %cst_37 {dimension_numbers = #tpu.dot_dimension_numbers<[1], [0], [0], [1], [0, 0, 1, 1], [], []>} : vector<8x128xf32>, vector<128x512xf32>, vector<8x512xf32> -> vector<8x512xf32>
    %140 = arith.addf %138, %139 : vector<8x512xf32>
    %141 = vector.extract_strided_slice %140 {offsets = [0, 0], sizes = [8, 128], strides = [1, 1]} : vector<8x512xf32> to vector<8x128xf32>
    %142 = arith.negf %141 : vector<8x128xf32>
    %143 = math.exp %142 : vector<8x128xf32>
    %cst_38 = arith.constant 1.000000e+00 : f32
    %144 = vector.broadcast %cst_38 : f32 to vector<8x128xf32>
    %145 = arith.addf %144, %143 : vector<8x128xf32>
    %146 = arith.divf %144, %145 : vector<8x128xf32>
    %147 = vector.extract_strided_slice %140 {offsets = [0, 128], sizes = [8, 128], strides = [1, 1]} : vector<8x512xf32> to vector<8x128xf32>
    %148 = arith.negf %147 : vector<8x128xf32>
    %149 = math.exp %148 : vector<8x128xf32>
    %cst_39 = arith.constant 1.000000e+00 : f32
    %150 = vector.broadcast %cst_39 : f32 to vector<8x128xf32>
    %151 = arith.addf %150, %149 : vector<8x128xf32>
    %152 = arith.divf %150, %151 : vector<8x128xf32>
    %153 = vector.extract_strided_slice %140 {offsets = [0, 256], sizes = [8, 128], strides = [1, 1]} : vector<8x512xf32> to vector<8x128xf32>
    %154 = math.tanh %153 : vector<8x128xf32>
    %155 = vector.extract_strided_slice %140 {offsets = [0, 384], sizes = [8, 128], strides = [1, 1]} : vector<8x512xf32> to vector<8x128xf32>
    %156 = arith.negf %155 : vector<8x128xf32>
    %157 = math.exp %156 : vector<8x128xf32>
    %cst_40 = arith.constant 1.000000e+00 : f32
    %158 = vector.broadcast %cst_40 : f32 to vector<8x128xf32>
    %159 = arith.addf %158, %157 : vector<8x128xf32>
    %160 = arith.divf %158, %159 : vector<8x128xf32>
    %161 = arith.mulf %152, %132 : vector<8x128xf32>
    %162 = arith.mulf %146, %154 : vector<8x128xf32>
    %163 = arith.addf %161, %162 : vector<8x128xf32>
    %164 = math.tanh %163 : vector<8x128xf32>
    %165 = arith.mulf %160, %164 : vector<8x128xf32>
    %c5_i32 = arith.constant 5 : i32
    %c8_i32_41 = arith.constant 8 : i32
    %166 = arith.muli %c5_i32, %c8_i32_41 : i32
    %167 = tpu.assume_multiple %166, 8 : i32
    %168 = arith.index_cast %167 : i32 to index
    %c0_42 = arith.constant 0 : index
    %169 = vector.load %arg8[%168, %c0_42] : memref<64x512xf32, #tpu.memory_space<vmem>>, vector<8x512xf32>
    %cst_43 = arith.constant dense<0.000000e+00> : vector<8x512xf32>
    %170 = tpu.matmul %165, %8, %cst_43 {dimension_numbers = #tpu.dot_dimension_numbers<[1], [0], [0], [1], [0, 0, 1, 1], [], []>} : vector<8x128xf32>, vector<128x512xf32>, vector<8x512xf32> -> vector<8x512xf32>
    %171 = arith.addf %169, %170 : vector<8x512xf32>
    %172 = vector.extract_strided_slice %171 {offsets = [0, 0], sizes = [8, 128], strides = [1, 1]} : vector<8x512xf32> to vector<8x128xf32>
    %173 = arith.negf %172 : vector<8x128xf32>
    %174 = math.exp %173 : vector<8x128xf32>
    %cst_44 = arith.constant 1.000000e+00 : f32
    %175 = vector.broadcast %cst_44 : f32 to vector<8x128xf32>
    %176 = arith.addf %175, %174 : vector<8x128xf32>
    %177 = arith.divf %175, %176 : vector<8x128xf32>
    %178 = vector.extract_strided_slice %171 {offsets = [0, 128], sizes = [8, 128], strides = [1, 1]} : vector<8x512xf32> to vector<8x128xf32>
    %179 = arith.negf %178 : vector<8x128xf32>
    %180 = math.exp %179 : vector<8x128xf32>
    %cst_45 = arith.constant 1.000000e+00 : f32
    %181 = vector.broadcast %cst_45 : f32 to vector<8x128xf32>
    %182 = arith.addf %181, %180 : vector<8x128xf32>
    %183 = arith.divf %181, %182 : vector<8x128xf32>
    %184 = vector.extract_strided_slice %171 {offsets = [0, 256], sizes = [8, 128], strides = [1, 1]} : vector<8x512xf32> to vector<8x128xf32>
    %185 = math.tanh %184 : vector<8x128xf32>
    %186 = vector.extract_strided_slice %171 {offsets = [0, 384], sizes = [8, 128], strides = [1, 1]} : vector<8x512xf32> to vector<8x128xf32>
    %187 = arith.negf %186 : vector<8x128xf32>
    %188 = math.exp %187 : vector<8x128xf32>
    %cst_46 = arith.constant 1.000000e+00 : f32
    %189 = vector.broadcast %cst_46 : f32 to vector<8x128xf32>
    %190 = arith.addf %189, %188 : vector<8x128xf32>
    %191 = arith.divf %189, %190 : vector<8x128xf32>
    %192 = arith.mulf %183, %163 : vector<8x128xf32>
    %193 = arith.mulf %177, %185 : vector<8x128xf32>
    %194 = arith.addf %192, %193 : vector<8x128xf32>
    %195 = math.tanh %194 : vector<8x128xf32>
    %196 = arith.mulf %191, %195 : vector<8x128xf32>
    %c6_i32 = arith.constant 6 : i32
    %c8_i32_47 = arith.constant 8 : i32
    %197 = arith.muli %c6_i32, %c8_i32_47 : i32
    %198 = tpu.assume_multiple %197, 8 : i32
    %199 = arith.index_cast %198 : i32 to index
    %c0_48 = arith.constant 0 : index
    %200 = vector.load %arg8[%199, %c0_48] : memref<64x512xf32, #tpu.memory_space<vmem>>, vector<8x512xf32>
    %cst_49 = arith.constant dense<0.000000e+00> : vector<8x512xf32>
    %201 = tpu.matmul %196, %8, %cst_49 {dimension_numbers = #tpu.dot_dimension_numbers<[1], [0], [0], [1], [0, 0, 1, 1], [], []>} : vector<8x128xf32>, vector<128x512xf32>, vector<8x512xf32> -> vector<8x512xf32>
    %202 = arith.addf %200, %201 : vector<8x512xf32>
    %203 = vector.extract_strided_slice %202 {offsets = [0, 0], sizes = [8, 128], strides = [1, 1]} : vector<8x512xf32> to vector<8x128xf32>
    %204 = arith.negf %203 : vector<8x128xf32>
    %205 = math.exp %204 : vector<8x128xf32>
    %cst_50 = arith.constant 1.000000e+00 : f32
    %206 = vector.broadcast %cst_50 : f32 to vector<8x128xf32>
    %207 = arith.addf %206, %205 : vector<8x128xf32>
    %208 = arith.divf %206, %207 : vector<8x128xf32>
    %209 = vector.extract_strided_slice %202 {offsets = [0, 128], sizes = [8, 128], strides = [1, 1]} : vector<8x512xf32> to vector<8x128xf32>
    %210 = arith.negf %209 : vector<8x128xf32>
    %211 = math.exp %210 : vector<8x128xf32>
    %cst_51 = arith.constant 1.000000e+00 : f32
    %212 = vector.broadcast %cst_51 : f32 to vector<8x128xf32>
    %213 = arith.addf %212, %211 : vector<8x128xf32>
    %214 = arith.divf %212, %213 : vector<8x128xf32>
    %215 = vector.extract_strided_slice %202 {offsets = [0, 256], sizes = [8, 128], strides = [1, 1]} : vector<8x512xf32> to vector<8x128xf32>
    %216 = math.tanh %215 : vector<8x128xf32>
    %217 = vector.extract_strided_slice %202 {offsets = [0, 384], sizes = [8, 128], strides = [1, 1]} : vector<8x512xf32> to vector<8x128xf32>
    %218 = arith.negf %217 : vector<8x128xf32>
    %219 = math.exp %218 : vector<8x128xf32>
    %cst_52 = arith.constant 1.000000e+00 : f32
    %220 = vector.broadcast %cst_52 : f32 to vector<8x128xf32>
    %221 = arith.addf %220, %219 : vector<8x128xf32>
    %222 = arith.divf %220, %221 : vector<8x128xf32>
    %223 = arith.mulf %214, %194 : vector<8x128xf32>
    %224 = arith.mulf %208, %216 : vector<8x128xf32>
    %225 = arith.addf %223, %224 : vector<8x128xf32>
    %226 = math.tanh %225 : vector<8x128xf32>
    %227 = arith.mulf %222, %226 : vector<8x128xf32>
    %c7_i32 = arith.constant 7 : i32
    %c8_i32_53 = arith.constant 8 : i32
    %228 = arith.muli %c7_i32, %c8_i32_53 : i32
    %229 = tpu.assume_multiple %228, 8 : i32
    %230 = arith.index_cast %229 : i32 to index
    %c0_54 = arith.constant 0 : index
    %231 = vector.load %arg8[%230, %c0_54] : memref<64x512xf32, #tpu.memory_space<vmem>>, vector<8x512xf32>
    %cst_55 = arith.constant dense<0.000000e+00> : vector<8x512xf32>
    %232 = tpu.matmul %227, %8, %cst_55 {dimension_numbers = #tpu.dot_dimension_numbers<[1], [0], [0], [1], [0, 0, 1, 1], [], []>} : vector<8x128xf32>, vector<128x512xf32>, vector<8x512xf32> -> vector<8x512xf32>
    %233 = arith.addf %231, %232 : vector<8x512xf32>
    %234 = vector.extract_strided_slice %233 {offsets = [0, 0], sizes = [8, 128], strides = [1, 1]} : vector<8x512xf32> to vector<8x128xf32>
    %235 = arith.negf %234 : vector<8x128xf32>
    %236 = math.exp %235 : vector<8x128xf32>
    %cst_56 = arith.constant 1.000000e+00 : f32
    %237 = vector.broadcast %cst_56 : f32 to vector<8x128xf32>
    %238 = arith.addf %237, %236 : vector<8x128xf32>
    %239 = arith.divf %237, %238 : vector<8x128xf32>
    %240 = vector.extract_strided_slice %233 {offsets = [0, 128], sizes = [8, 128], strides = [1, 1]} : vector<8x512xf32> to vector<8x128xf32>
    %241 = arith.negf %240 : vector<8x128xf32>
    %242 = math.exp %241 : vector<8x128xf32>
    %cst_57 = arith.constant 1.000000e+00 : f32
    %243 = vector.broadcast %cst_57 : f32 to vector<8x128xf32>
    %244 = arith.addf %243, %242 : vector<8x128xf32>
    %245 = arith.divf %243, %244 : vector<8x128xf32>
    %246 = vector.extract_strided_slice %233 {offsets = [0, 256], sizes = [8, 128], strides = [1, 1]} : vector<8x512xf32> to vector<8x128xf32>
    %247 = math.tanh %246 : vector<8x128xf32>
    %248 = vector.extract_strided_slice %233 {offsets = [0, 384], sizes = [8, 128], strides = [1, 1]} : vector<8x512xf32> to vector<8x128xf32>
    %249 = arith.negf %248 : vector<8x128xf32>
    %250 = math.exp %249 : vector<8x128xf32>
    %cst_58 = arith.constant 1.000000e+00 : f32
    %251 = vector.broadcast %cst_58 : f32 to vector<8x128xf32>
    %252 = arith.addf %251, %250 : vector<8x128xf32>
    %253 = arith.divf %251, %252 : vector<8x128xf32>
    %254 = arith.mulf %245, %225 : vector<8x128xf32>
    %255 = arith.mulf %239, %247 : vector<8x128xf32>
    %256 = arith.addf %254, %255 : vector<8x128xf32>
    %257 = math.tanh %256 : vector<8x128xf32>
    %258 = arith.mulf %253, %257 : vector<8x128xf32>
    %c8_i32_59 = arith.constant 8 : i32
    %c0_60 = arith.constant 0 : index
    %c0_61 = arith.constant 0 : index
    %259 = vector.load %arg5[%c0_60, %c0_61] : memref<128x128xf32, #tpu.memory_space<vmem>>, vector<128x128xf32>
    %cst_62 = arith.constant dense<0.000000e+00> : vector<8x128xf32>
    %260 = tpu.matmul %258, %259, %cst_62 {dimension_numbers = #tpu.dot_dimension_numbers<[1], [0], [0], [1], [0, 0, 1, 1], [], []>} : vector<8x128xf32>, vector<128x128xf32>, vector<8x128xf32> -> vector<8x128xf32>
    %c0_63 = arith.constant 0 : index
    %c0_64 = arith.constant 0 : index
    %261 = vector.load %arg6[%c0_63, %c0_64] : memref<1x128xf32, #tpu.memory_space<vmem>>, vector<1x128xf32>
    %262 = vector.broadcast %261 : vector<1x128xf32> to vector<8x128xf32>
    %263 = arith.addf %260, %262 : vector<8x128xf32>
    %c0_65 = arith.constant 0 : index
    %c0_66 = arith.constant 0 : index
    %c0_67 = arith.constant 0 : index
    %264 = vector.load %arg7[%c0_65, %c0_66, %c0_67] : memref<1x8x128xf32, #tpu.memory_space<vmem>>, vector<1x8x128xf32>
    %265 = vector.shape_cast %264 : vector<1x8x128xf32> to vector<8x128xf32>
    %266 = vector.shape_cast %263 : vector<8x128xf32> to vector<1x8x128xf32>
    tpu.vector_store %arg7[%c0_65, %c0_66, %c0_67], %266 {strides = array<i32>} : memref<1x8x128xf32, #tpu.memory_space<vmem>>, vector<1x8x128xf32>,
    return
  }
  func.func @transform_0(%arg0: i32) -> (i32, i32, i32) {
    %c0_i32 = arith.constant 0 : i32
    %c0_i32_0 = arith.constant 0 : i32
    %c0_i32_1 = arith.constant 0 : i32
    return %arg0, %c0_i32, %c0_i32_0 : i32, i32, i32
  }
  func.func @transform_1(%arg0: i32) -> (i32, i32) {
    %c0_i32 = arith.constant 0 : i32
    %c0_i32_0 = arith.constant 0 : i32
    %c0_i32_1 = arith.constant 0 : i32
    return %c0_i32, %c0_i32_0 : i32, i32
  }
  func.func @transform_2(%arg0: i32) -> (i32, i32) {
    %c0_i32 = arith.constant 0 : i32
    %c0_i32_0 = arith.constant 0 : i32
    %c0_i32_1 = arith.constant 0 : i32
    return %c0_i32, %c0_i32_0 : i32, i32
  }
  func.func @transform_3(%arg0: i32) -> (i32, i32) {
    %c0_i32 = arith.constant 0 : i32
    %c0_i32_0 = arith.constant 0 : i32
    %c0_i32_1 = arith.constant 0 : i32
    return %c0_i32, %c0_i32_0 : i32, i32
  }
  func.func @transform_4(%arg0: i32) -> (i32, i32) {
    %c0_i32 = arith.constant 0 : i32
    %c0_i32_0 = arith.constant 0 : i32
    %c0_i32_1 = arith.constant 0 : i32
    return %c0_i32, %c0_i32_0 : i32, i32
  }
  func.func @transform_5(%arg0: i32) -> (i32, i32) {
    %c0_i32 = arith.constant 0 : i32
    %c0_i32_0 = arith.constant 0 : i32
    %c0_i32_1 = arith.constant 0 : i32
    return %c0_i32, %c0_i32_0 : i32, i32
  }
  func.func @transform_6(%arg0: i32) -> (i32, i32, i32) {
    %c0_i32 = arith.constant 0 : i32
    %c0_i32_0 = arith.constant 0 : i32
    %c0_i32_1 = arith.constant 0 : i32
    return %arg0, %c0_i32, %c0_i32_0 : i32, i32, i32
  }
}

</mosaic_0001>

<llo_original>
// kernel: tpu_custom_call.1
$region0: #{tpu_custom_call.1}
  #allocation0 [shape = 'u32[]', space=smem, size = 0x4, offset = 0x4, fixed_abs, tag = 'smem constant byte address 0x4 - core index']
  #allocation1 [shape = 'u32[144,128]{1,0:T(1,128)}', space=vmem, size = 0x12000, scoped, tag = 'internal scratch']
  #allocation2 [shape = 'f32[64,512]{1,0:T(8,128)}', space=vmem, size = 0x20000, scoped, tag = 'scratch operand']
  %s0 = inlined_call_operand.hbm [shape: f32[1,64,128], index: 0, kind: input, shape index: {}]
  %s1 = inlined_call_operand.hbm [shape: f32[128,512], index: 1, kind: input, shape index: {}]
  %s2 = inlined_call_operand.hbm [shape: f32[128,512], index: 2, kind: input, shape index: {}]
  %s3 = inlined_call_operand.vmem [shape: f32[1,512], index: 3, kind: input, shape index: {}]
  %s4 = inlined_call_operand.hbm [shape: f32[128,128], index: 4, kind: input, shape index: {}]
  %s5 = inlined_call_operand.vmem [shape: f32[1,128], index: 5, kind: input, shape index: {}]
  %s6 = inlined_call_operand.hbm [shape: f32[1,8,128], index: 6, kind: output, shape index: {}]
  %s7 = sld [smem:[#allocation0]]
  $region50: #{tpu_custom_call.1} parent=0
    _
  %s9 = ssub.s32 1, %s7
  %s10 = scalar_select 0, %s9, %s7
  $region1: #{tpu_custom_call.1} parent=0
    #allocation3 [shape = 'u8[32768]{0}', space=vmem, size = 0x8000, scoped, tag = 'input window, operand 0, single buffered']
    #allocation4 [shape = 's32[1]{0}', space=sflag, size = 0x4, scoped, tag = 'scoped memory for tpu_custom_call.1']
    #allocation5 [shape = 's32[1]{0}', space=sflag, size = 0x4, scoped, tag = 'scoped memory for tpu_custom_call.1']
    #allocation6 [shape = 'u8[262144]{0}', space=vmem, size = 0x40000, scoped, tag = 'input window, operand 1, single buffered']
    #allocation7 [shape = 's32[1]{0}', space=sflag, size = 0x4, scoped, tag = 'scoped memory for tpu_custom_call.1']
    #allocation8 [shape = 'u8[262144]{0}', space=vmem, size = 0x40000, scoped, tag = 'input window, operand 2, single buffered']
    #allocation9 [shape = 'u8[65536]{0}', space=vmem, size = 0x10000, scoped, tag = 'input window, operand 4, single buffered']
    #allocation10 [shape = 's32[1]{0}', space=sflag, size = 0x4, scoped, tag = 'scoped memory for tpu_custom_call.1']
    #allocation11 [shape = 'u8[4096]{0}', space=vmem, size = 0x1000, scoped, tag = 'output window, operand 0, single buffered']
    %11 = vsyncpa [#allocation4], 0
    %12 = vsyncpa [#allocation7], 0
    %13 = vsyncpa [#allocation10], 0
    %14 = vsyncpa [#allocation5], 0
    // Predicated region
    $region2: #{tpu_custom_call.1} parent=1 // pred_check
      _
    $region3: #{tpu_custom_call.1} parent=1 // pred_check_branch
      %16 = sbr.rel (0) target = $region5
    $region4: #{tpu_custom_call.1} parent=1 // pred_region
      %s18 = ssub.s32 1024, 1024
      %19 = vsyncadd [#allocation4], %s18
      %s20 = sshll.u32 [#allocation3], 4
      %s21 = int_to_ptr.vmem [resolvable:$true] %s20
      %26 = dma.hbm_to_vmem [thread:$0]  %s0, 1024, %s21, [#allocation4], 128, 128, 8
    $region5: #{tpu_custom_call.1} parent=1 // pred_fallthru
      _
    // Predicated region
    $region6: #{tpu_custom_call.1} parent=1 // pred_check
      _
    $region7: #{tpu_custom_call.1} parent=1 // pred_check_branch
      %28 = sbr.rel (0) target = $region9
    $region8: #{tpu_custom_call.1} parent=1 // pred_region
      %s30 = ssub.s32 8192, 8192
      %31 = vsyncadd [#allocation7], %s30
      %s32 = sshll.u32 [#allocation6], 4
      %s33 = int_to_ptr.vmem [resolvable:$true] %s32
      %38 = dma.hbm_to_vmem [thread:$0]  %s1, 8192, %s33, [#allocation7], 512, 512, 32
    $region9: #{tpu_custom_call.1} parent=1 // pred_fallthru
      _
    // Predicated region
    $region10: #{tpu_custom_call.1} parent=1 // pred_check
      _
    $region11: #{tpu_custom_call.1} parent=1 // pred_check_branch
      %40 = sbr.rel (0) target = $region13
    $region12: #{tpu_custom_call.1} parent=1 // pred_region
      %s42 = ssub.s32 8192, 8192
      %43 = vsyncadd [#allocation7], %s42
      %s44 = sshll.u32 [#allocation8], 4
      %s45 = int_to_ptr.vmem [resolvable:$true] %s44
      %50 = dma.hbm_to_vmem [thread:$0]  %s2, 8192, %s45, [#allocation7], 512, 512, 32
    $region13: #{tpu_custom_call.1} parent=1 // pred_fallthru
      _
    // Predicated region
    $region14: #{tpu_custom_call.1} parent=1 // pred_check
      _
    $region15: #{tpu_custom_call.1} parent=1 // pred_check_branch
      %52 = sbr.rel (0) target = $region17
    $region16: #{tpu_custom_call.1} parent=1 // pred_region
      _
    $region17: #{tpu_custom_call.1} parent=1 // pred_fallthru
      _
    // Predicated region
    $region18: #{tpu_custom_call.1} parent=1 // pred_check
      _
    $region19: #{tpu_custom_call.1} parent=1 // pred_check_branch
      %54 = sbr.rel (0) target = $region21
    $region20: #{tpu_custom_call.1} parent=1 // pred_region
      %s56 = ssub.s32 2048, 2048
      %57 = vsyncadd [#allocation10], %s56
      %s58 = sshll.u32 [#allocation9], 4
      %s59 = int_to_ptr.vmem [resolvable:$true] %s58
      %64 = dma.hbm_to_vmem [thread:$0]  %s4, 2048, %s59, [#allocation10], 128, 128, 8
    $region21: #{tpu_custom_call.1} parent=1 // pred_fallthru
      _
    // Predicated region
    $region22: #{tpu_custom_call.1} parent=1 // pred_check
      _
    $region23: #{tpu_custom_call.1} parent=1 // pred_check_branch
      %66 = sbr.rel (0) target = $region25
    $region24: #{tpu_custom_call.1} parent=1 // pred_region
      _
    $region25: #{tpu_custom_call.1} parent=1 // pred_fallthru
      _
    // Predicated region
    $region26: #{tpu_custom_call.1} parent=1 // pred_check
      _
    $region27: #{tpu_custom_call.1} parent=1 // pred_check_branch
      %68 = sbr.rel (0) target = $region29
    $region28: #{tpu_custom_call.1} parent=1 // pred_region
      %69 = dma.done [#allocation4], 1024
    $region29: #{tpu_custom_call.1} parent=1 // pred_fallthru
      _
    // Predicated region
    $region30: #{tpu_custom_call.1} parent=1 // pred_check
      _
    $region31: #{tpu_custom_call.1} parent=1 // pred_check_branch
      %71 = sbr.rel (0) target = $region33
    $region32: #{tpu_custom_call.1} parent=1 // pred_region
      %72 = dma.done [#allocation7], 8192
    $region33: #{tpu_custom_call.1} parent=1 // pred_fallthru
      _
    // Predicated region
    $region34: #{tpu_custom_call.1} parent=1 // pred_check
      _
    $region35: #{tpu_custom_call.1} parent=1 // pred_check_branch
      %74 = sbr.rel (0) target = $region37
    $region36: #{tpu_custom_call.1} parent=1 // pred_region
      %75 = dma.done [#allocation7], 8192
    $region37: #{tpu_custom_call.1} parent=1 // pred_fallthru
      _
    // Predicated region
    $region38: #{tpu_custom_call.1} parent=1 // pred_check
      _
    $region39: #{tpu_custom_call.1} parent=1 // pred_check_branch
      %77 = sbr.rel (0) target = $region41
    $region40: #{tpu_custom_call.1} parent=1 // pred_region
      %78 = dma.done [#allocation10], 2048
    $region41: #{tpu_custom_call.1} parent=1 // pred_fallthru
      _
    %v79 = vld [vmem:[#allocation3] sm:$0xff]
    %v80 = vld [vmem:[#allocation3 + $0x8] sm:$0xff]
    %v81 = vld [vmem:[#allocation3 + $0x10] sm:$0xff]
    %v82 = vld [vmem:[#allocation3 + $0x18] sm:$0xff]
    %v83 = vld [vmem:[#allocation3 + $0x20] sm:$0xff]
    %v84 = vld [vmem:[#allocation3 + $0x28] sm:$0xff]
    %v85 = vld [vmem:[#allocation3 + $0x30] sm:$0xff]
    %v86 = vld [vmem:[#allocation3 + $0x38] sm:$0xff]
    %v87 = vld [vmem:[#allocation6] sm:$0xff]
    %v88 = vld [vmem:[#allocation6 + $0x8] sm:$0xff]
    %v89 = vld [vmem:[#allocation6 + $0x10] sm:$0xff]
    %v90 = vld [vmem:[#allocation6 + $0x18] sm:$0xff]
    %v91 = vld [vmem:[#allocation6 + $0x20] sm:$0xff]
    %v92 = vld [vmem:[#allocation6 + $0x28] sm:$0xff]
    %v93 = vld [vmem:[#allocation6 + $0x30] sm:$0xff]
    %v94 = vld [vmem:[#allocation6 + $0x38] sm:$0xff]
    %v95 = vld [vmem:[#allocation6 + $0x40] sm:$0xff]
    %v96 = vld [vmem:[#allocation6 + $0x48] sm:$0xff]
    %v97 = vld [vmem:[#allocation6 + $0x50] sm:$0xff]
    %v98 = vld [vmem:[#allocation6 + $0x58] sm:$0xff]
    %v99 = vld [vmem:[#allocation6 + $0x60] sm:$0xff]
    %v100 = vld [vmem:[#allocation6 + $0x68] sm:$0xff]
    %v101 = vld [vmem:[#allocation6 + $0x70] sm:$0xff]
    %v102 = vld [vmem:[#allocation6 + $0x78] sm:$0xff]
    %v103 = vld [vmem:[#allocation6 + $0x80] sm:$0xff]
    %v104 = vld [vmem:[#allocation6 + $0x88] sm:$0xff]
    %v105 = vld [vmem:[#allocation6 + $0x90] sm:$0xff]
    %v106 = vld [vmem:[#allocation6 + $0x98] sm:$0xff]
    %v107 = vld [vmem:[#allocation6 + $0xa0] sm:$0xff]
    %v108 = vld [vmem:[#allocation6 + $0xa8] sm:$0xff]
    %v109 = vld [vmem:[#allocation6 + $0xb0] sm:$0xff]
    %v110 = vld [vmem:[#allocation6 + $0xb8] sm:$0xff]
    %v111 = vld [vmem:[#allocation6 + $0xc0] sm:$0xff]
    %v112 = vld [vmem:[#allocation6 + $0xc8] sm:$0xff]
    %v113 = vld [vmem:[#allocation6 + $0xd0] sm:$0xff]
    %v114 = vld [vmem:[#allocation6 + $0xd8] sm:$0xff]
    %v115 = vld [vmem:[#allocation6 + $0xe0] sm:$0xff]
    %v116 = vld [vmem:[#allocation6 + $0xe8] sm:$0xff]
    %v117 = vld [vmem:[#allocation6 + $0xf0] sm:$0xff]
    %v118 = vld [vmem:[#allocation6 + $0xf8] sm:$0xff]
    %v119 = vld [vmem:[#allocation6 + $0x100] sm:$0xff]
    %v120 = vld [vmem:[#allocation6 + $0x108] sm:$0xff]
    %v121 = vld [vmem:[#allocation6 + $0x110] sm:$0xff]
    %v122 = vld [vmem:[#allocation6 + $0x118] sm:$0xff]
    %v123 = vld [vmem:[#allocation6 + $0x120] sm:$0xff]
    %v124 = vld [vmem:[#allocation6 + $0x128] sm:$0xff]
    %v125 = vld [vmem:[#allocation6 + $0x130] sm:$0xff]
    %v126 = vld [vmem:[#allocation6 + $0x138] sm:$0xff]
    %v127 = vld [vmem:[#allocation6 + $0x140] sm:$0xff]
    %v128 = vld [vmem:[#allocation6 + $0x148] sm:$0xff]
    %v129 = vld [vmem:[#allocation6 + $0x150] sm:$0xff]
    %v130 = vld [vmem:[#allocation6 + $0x158] sm:$0xff]
    %v131 = vld [vmem:[#allocation6 + $0x160] sm:$0xff]
    %v132 = vld [vmem:[#allocation6 + $0x168] sm:$0xff]
    %v133 = vld [vmem:[#allocation6 + $0x170] sm:$0xff]
    %v134 = vld [vmem:[#allocation6 + $0x178] sm:$0xff]
    %v135 = vld [vmem:[#allocation6 + $0x180] sm:$0xff]
    %v136 = vld [vmem:[#allocation6 + $0x188] sm:$0xff]
    %v137 = vld [vmem:[#allocation6 + $0x190] sm:$0xff]
    %v138 = vld [vmem:[#allocation6 + $0x198] sm:$0xff]
    %v139 = vld [vmem:[#allocation6 + $0x1a0] sm:$0xff]
    %v140 = vld [vmem:[#allocation6 + $0x1a8] sm:$0xff]
    %v141 = vld [vmem:[#allocation6 + $0x1b0] sm:$0xff]
    %v142 = vld [vmem:[#allocation6 + $0x1b8] sm:$0xff]
    %v143 = vld [vmem:[#allocation6 + $0x1c0] sm:$0xff]
    %v144 = vld [vmem:[#allocation6 + $0x1c8] sm:$0xff]
    %v145 = vld [vmem:[#allocation6 + $0x1d0] sm:$0xff]
    %v146 = vld [vmem:[#allocation6 + $0x1d8] sm:$0xff]
    %v147 = vld [vmem:[#allocation6 + $0x1e0] sm:$0xff]
    %v148 = vld [vmem:[#allocation6 + $0x1e8] sm:$0xff]
    %v149 = vld [vmem:[#allocation6 + $0x1f0] sm:$0xff]
    %v150 = vld [vmem:[#allocation6 + $0x1f8] sm:$0xff]
    %v151 = vld [vmem:[%s3] sm:$0xf]
    %v153 = vlaneseq
    %v154 = vshrl.u32 %v153, 7
    %v155 = vsub.s32 0, %v154
    %v156 = vrot.slane %v151, %v155
    %v157 = vlaneseq
    %v158 = vshrl.u32 %v157, 7
    %v159 = vsub.s32 1, %v158
    %v160 = vrot.slane %v151, %v159
    %v161 = vlaneseq
    %v162 = vshrl.u32 %v161, 7
    %v163 = vsub.s32 2, %v162
    %v164 = vrot.slane %v151, %v163
    %v165 = vlaneseq
    %v166 = vshrl.u32 %v165, 7
    %v167 = vsub.s32 3, %v166
    %v168 = vrot.slane %v151, %v167
    %173 = vmatprep.subr.mxu0 %v148
    %174 = vmatpush1.msra.mxu0 %v147
    %175 = vmatprep.subr.mxu0 %v144
    %176 = vmatpush1.msra.mxu0 %v143
    %177 = vmatprep.subr.mxu0 %v140
    %178 = vmatpush1.msra.mxu0 %v139
    %179 = vmatprep.subr.mxu0 %v136
    %180 = vmatpush1.msra.mxu0 %v135
    %181 = vmatprep.subr.mxu0 %v132
    %182 = vmatpush1.msra.mxu0 %v131
    %183 = vmatprep.subr.mxu0 %v128
    %184 = vmatpush1.msra.mxu0 %v127
    %185 = vmatprep.subr.mxu0 %v124
    %186 = vmatpush1.msra.mxu0 %v123
    %187 = vmatprep.subr.mxu0 %v120
    %188 = vmatpush1.msra.mxu0 %v119
    %189 = vmatprep.subr.mxu0 %v116
    %190 = vmatpush1.msra.mxu0 %v115
    %191 = vmatprep.subr.mxu0 %v112
    %192 = vmatpush1.msra.mxu0 %v111
    %193 = vmatprep.subr.mxu0 %v108
    %194 = vmatpush1.msra.mxu0 %v107
    %195 = vmatprep.subr.mxu0 %v104
    %196 = vmatpush1.msra.mxu0 %v103
    %197 = vmatprep.subr.mxu0 %v100
    %198 = vmatpush1.msra.mxu0 %v99
    %199 = vmatprep.subr.mxu0 %v96
    %200 = vmatpush1.msra.mxu0 %v95
    %201 = vmatprep.subr.mxu0 %v92
    %202 = vmatpush1.msra.mxu0 %v91
    %203 = vmatprep.subr.mxu0 %v88
    %204 = vmatpush1.msra.mxu0 %v87
    %205 = vmatprep.subr.mxu0 0.0
    %206 = vmatpush2.msra.mxu0 0.0
    %207 = vmatprep.subr.mxu0 0.0
    %208 = vmatpush2.msra.mxu0 0.0
    %209 = vmatprep.subr.mxu0 0.0
    %210 = vmatpush2.msra.mxu0 0.0
    %211 = vmatprep.subr.mxu0 0.0
    %212 = vmatpush2.msra.mxu0 0.0
    %213 = vmatprep.subr.mxu0 0.0
    %214 = vmatpush2.msra.mxu0 0.0
    %215 = vmatprep.subr.mxu0 0.0
    %216 = vmatpush2.msra.mxu0 0.0
    %217 = vmatprep.subr.mxu0 0.0
    %218 = vmatpush2.msra.mxu0 0.0
    %219 = vmatprep.subr.mxu0 0.0
    %220 = vmatpush2.msra.mxu0 0.0
    %221 = vmatprep.subr.mxu0 0.0
    %222 = vmatpush2.msra.mxu0 0.0
    %223 = vmatprep.subr.mxu0 0.0
    %224 = vmatpush2.msra.mxu0 0.0
    %225 = vmatprep.subr.mxu0 0.0
    %226 = vmatpush2.msra.mxu0 0.0
    %227 = vmatprep.subr.mxu0 0.0
    %228 = vmatpush2.msra.mxu0 0.0
    %229 = vmatprep.subr.mxu0 0.0
    %230 = vmatpush2.msra.mxu0 0.0
    %231 = vmatprep.subr.mxu0 0.0
    %232 = vmatpush2.msra.mxu0 0.0
    %233 = vmatprep.subr.mxu0 0.0
    %234 = vmatpush2.msra.mxu0 0.0
    %235 = vmatprep.subr.mxu0 0.0
    %236 = vmatpush2.msra.mxu0 0.0
    %237 = vmatprep.mubr.f32.mxu0 0.0
    %238 = vmatmul.mubr.f32.gmra.mxu0 %v79
    %v239 = vpop.f32.mrf.mxu0
    %v240 = vadd.f32 %v156, %v239
    %v241 = vpop.f32.mrf.mxu0
    %v242 = vadd.f32 %v160, %v241
    %243 = vmatprep.mubr.f32.mxu0 0.0
    %244 = vmatmul.mubr.f32.gmra.mxu0 %v80
    %v245 = vpop.f32.mrf.mxu0
    %v246 = vadd.f32 %v156, %v245
    %v247 = vpop.f32.mrf.mxu0
    %v248 = vadd.f32 %v160, %v247
    %249 = vmatprep.mubr.f32.mxu0 0.0
    %250 = vmatmul.mubr.f32.gmra.mxu0 %v81
    %v251 = vpop.f32.mrf.mxu0
    %v252 = vadd.f32 %v156, %v251
    %v253 = vpop.f32.mrf.mxu0
    %v254 = vadd.f32 %v160, %v253
    %255 = vmatprep.mubr.f32.mxu0 0.0
    %256 = vmatmul.mubr.f32.gmra.mxu0 %v82
    %v257 = vpop.f32.mrf.mxu0
    %v258 = vadd.f32 %v156, %v257
    %v259 = vpop.f32.mrf.mxu0
    %v260 = vadd.f32 %v160, %v259
    %261 = vmatprep.mubr.f32.mxu0 0.0
    %262 = vmatmul.mubr.f32.gmra.mxu0 %v83
    %v263 = vpop.f32.mrf.mxu0
    %v264 = vadd.f32 %v156, %v263
    %v265 = vpop.f32.mrf.mxu0
    %v266 = vadd.f32 %v160, %v265
    %267 = vmatprep.mubr.f32.mxu0 0.0
    %268 = vmatmul.mubr.f32.gmra.mxu0 %v84
    %v269 = vpop.f32.mrf.mxu0
    %v270 = vadd.f32 %v156, %v269
    %v271 = vpop.f32.mrf.mxu0
    %v272 = vadd.f32 %v160, %v271
    %273 = vmatprep.mubr.f32.mxu0 0.0
    %274 = vmatmul.mubr.f32.gmra.mxu0 %v85
    %v275 = vpop.f32.mrf.mxu0
    %v276 = vadd.f32 %v156, %v275
    %v277 = vpop.f32.mrf.mxu0
    %v278 = vadd.f32 %v160, %v277
    %279 = vmatprep.mubr.f32.mxu0 0.0
    %280 = vmatmul.mubr.f32.gmra.mxu0 %v86
    %v281 = vpop.f32.mrf.mxu0
    %v282 = vadd.f32 %v156, %v281
    %v283 = vpop.f32.mrf.mxu0
    %v284 = vadd.f32 %v160, %v283
    %285 = vdwg.mxu0
    %286 = vmatprep.subr.mxu0 %v150
    %287 = vmatpush1.msra.mxu0 %v149
    %288 = vmatprep.subr.mxu0 %v146
    %289 = vmatpush1.msra.mxu0 %v145
    %290 = vmatprep.subr.mxu0 %v142
    %291 = vmatpush1.msra.mxu0 %v141
    %292 = vmatprep.subr.mxu0 %v138
    %293 = vmatpush1.msra.mxu0 %v137
    %294 = vmatprep.subr.mxu0 %v134
    %295 = vmatpush1.msra.mxu0 %v133
    %296 = vmatprep.subr.mxu0 %v130
    %297 = vmatpush1.msra.mxu0 %v129
    %298 = vmatprep.subr.mxu0 %v126
    %299 = vmatpush1.msra.mxu0 %v125
    %300 = vmatprep.subr.mxu0 %v122
    %301 = vmatpush1.msra.mxu0 %v121
    %302 = vmatprep.subr.mxu0 %v118
    %303 = vmatpush1.msra.mxu0 %v117
    %304 = vmatprep.subr.mxu0 %v114
    %305 = vmatpush1.msra.mxu0 %v113
    %306 = vmatprep.subr.mxu0 %v110
    %307 = vmatpush1.msra.mxu0 %v109
    %308 = vmatprep.subr.mxu0 %v106
    %309 = vmatpush1.msra.mxu0 %v105
    %310 = vmatprep.subr.mxu0 %v102
    %311 = vmatpush1.msra.mxu0 %v101
    %312 = vmatprep.subr.mxu0 %v98
    %313 = vmatpush1.msra.mxu0 %v97
    %314 = vmatprep.subr.mxu0 %v94
    %315 = vmatpush1.msra.mxu0 %v93
    %316 = vmatprep.subr.mxu0 %v90
    %317 = vmatpush1.msra.mxu0 %v89
    %318 = vmatprep.subr.mxu0 0.0
    %319 = vmatpush2.msra.mxu0 0.0
    %320 = vmatprep.subr.mxu0 0.0
    %321 = vmatpush2.msra.mxu0 0.0
    %322 = vmatprep.subr.mxu0 0.0
    %323 = vmatpush2.msra.mxu0 0.0
    %324 = vmatprep.subr.mxu0 0.0
    %325 = vmatpush2.msra.mxu0 0.0
    %326 = vmatprep.subr.mxu0 0.0
    %327 = vmatpush2.msra.mxu0 0.0
    %328 = vmatprep.subr.mxu0 0.0
    %329 = vmatpush2.msra.mxu0 0.0
    %330 = vmatprep.subr.mxu0 0.0
    %331 = vmatpush2.msra.mxu0 0.0
    %332 = vmatprep.subr.mxu0 0.0
    %333 = vmatpush2.msra.mxu0 0.0
    %334 = vmatprep.subr.mxu0 0.0
    %335 = vmatpush2.msra.mxu0 0.0
    %336 = vmatprep.subr.mxu0 0.0
    %337 = vmatpush2.msra.mxu0 0.0
    %338 = vmatprep.subr.mxu0 0.0
    %339 = vmatpush2.msra.mxu0 0.0
    %340 = vmatprep.subr.mxu0 0.0
    %341 = vmatpush2.msra.mxu0 0.0
    %342 = vmatprep.subr.mxu0 0.0
    %343 = vmatpush2.msra.mxu0 0.0
    %344 = vmatprep.subr.mxu0 0.0
    %345 = vmatpush2.msra.mxu0 0.0
    %346 = vmatprep.subr.mxu0 0.0
    %347 = vmatpush2.msra.mxu0 0.0
    %348 = vmatprep.subr.mxu0 0.0
    %349 = vmatpush2.msra.mxu0 0.0
    %350 = vmatprep.mubr.f32.mxu0 0.0
    %351 = vmatmul.mubr.f32.gmra.mxu0 %v79
    %v352 = vpop.f32.mrf.mxu0
    %v353 = vadd.f32 %v164, %v352
    %v354 = vpop.f32.mrf.mxu0
    %v355 = vadd.f32 %v168, %v354
    %356 = vmatprep.mubr.f32.mxu0 0.0
    %357 = vmatmul.mubr.f32.gmra.mxu0 %v80
    %v358 = vpop.f32.mrf.mxu0
    %v359 = vadd.f32 %v164, %v358
    %v360 = vpop.f32.mrf.mxu0
    %v361 = vadd.f32 %v168, %v360
    %362 = vmatprep.mubr.f32.mxu0 0.0
    %363 = vmatmul.mubr.f32.gmra.mxu0 %v81
    %v364 = vpop.f32.mrf.mxu0
    %v365 = vadd.f32 %v164, %v364
    %v366 = vpop.f32.mrf.mxu0
    %v367 = vadd.f32 %v168, %v366
    %368 = vmatprep.mubr.f32.mxu0 0.0
    %369 = vmatmul.mubr.f32.gmra.mxu0 %v82
    %v370 = vpop.f32.mrf.mxu0
    %v371 = vadd.f32 %v164, %v370
    %v372 = vpop.f32.mrf.mxu0
    %v373 = vadd.f32 %v168, %v372
    %374 = vmatprep.mubr.f32.mxu0 0.0
    %375 = vmatmul.mubr.f32.gmra.mxu0 %v83
    %v376 = vpop.f32.mrf.mxu0
    %v377 = vadd.f32 %v164, %v376
    %v378 = vpop.f32.mrf.mxu0
    %v379 = vadd.f32 %v168, %v378
    %380 = vmatprep.mubr.f32.mxu0 0.0
    %381 = vmatmul.mubr.f32.gmra.mxu0 %v84
    %v382 = vpop.f32.mrf.mxu0
    %v383 = vadd.f32 %v164, %v382
    %v384 = vpop.f32.mrf.mxu0
    %v385 = vadd.f32 %v168, %v384
    %386 = vmatprep.mubr.f32.mxu0 0.0
    %387 = vmatmul.mubr.f32.gmra.mxu0 %v85
    %v388 = vpop.f32.mrf.mxu0
    %v389 = vadd.f32 %v164, %v388
    %v390 = vpop.f32.mrf.mxu0
    %v391 = vadd.f32 %v168, %v390
    %392 = vmatprep.mubr.f32.mxu0 0.0
    %393 = vmatmul.mubr.f32.gmra.mxu0 %v86
    %v394 = vpop.f32.mrf.mxu0
    %v395 = vadd.f32 %v164, %v394
    %v396 = vpop.f32.mrf.mxu0
    %v397 = vadd.f32 %v168, %v396
    %398 = vdwg.mxu0
    %399 = vst [vmem:[#allocation2] sm:$0xff] %v240
    %400 = vst [vmem:[#allocation2 + $0x8] sm:$0xff] %v242
    %401 = vst [vmem:[#allocation2 + $0x10] sm:$0xff] %v353
    %402 = vst [vmem:[#allocation2 + $0x18] sm:$0xff] %v355
    %403 = vst [vmem:[#allocation2 + $0x20] sm:$0xff] %v246
    %404 = vst [vmem:[#allocation2 + $0x28] sm:$0xff] %v248
    %405 = vst [vmem:[#allocation2 + $0x30] sm:$0xff] %v359
    %406 = vst [vmem:[#allocation2 + $0x38] sm:$0xff] %v361
    %407 = vst [vmem:[#allocation2 + $0x40] sm:$0xff] %v252
    %408 = vst [vmem:[#allocation2 + $0x48] sm:$0xff] %v254
    %409 = vst [vmem:[#allocation2 + $0x50] sm:$0xff] %v365
    %410 = vst [vmem:[#allocation2 + $0x58] sm:$0xff] %v367
    %411 = vst [vmem:[#allocation2 + $0x60] sm:$0xff] %v258
    %412 = vst [vmem:[#allocation2 + $0x68] sm:$0xff] %v260
    %413 = vst [vmem:[#allocation2 + $0x70] sm:$0xff] %v371
    %414 = vst [vmem:[#allocation2 + $0x78] sm:$0xff] %v373
    %415 = vst [vmem:[#allocation2 + $0x80] sm:$0xff] %v264
    %416 = vst [vmem:[#allocation2 + $0x88] sm:$0xff] %v266
    %417 = vst [vmem:[#allocation2 + $0x90] sm:$0xff] %v377
    %418 = vst [vmem:[#allocation2 + $0x98] sm:$0xff] %v379
    %419 = vst [vmem:[#allocation2 + $0xa0] sm:$0xff] %v270
    %420 = vst [vmem:[#allocation2 + $0xa8] sm:$0xff] %v272
    %421 = vst [vmem:[#allocation2 + $0xb0] sm:$0xff] %v383
    %422 = vst [vmem:[#allocation2 + $0xb8] sm:$0xff] %v385
    %423 = vst [vmem:[#allocation2 + $0xc0] sm:$0xff] %v276
    %424 = vst [vmem:[#allocation2 + $0xc8] sm:$0xff] %v278
    %425 = vst [vmem:[#allocation2 + $0xd0] sm:$0xff] %v389
    %426 = vst [vmem:[#allocation2 + $0xd8] sm:$0xff] %v391
    %427 = vst [vmem:[#allocation2 + $0xe0] sm:$0xff] %v282
    %428 = vst [vmem:[#allocation2 + $0xe8] sm:$0xff] %v284
    %429 = vst [vmem:[#allocation2 + $0xf0] sm:$0xff] %v395
    %430 = vst [vmem:[#allocation2 + $0xf8] sm:$0xff] %v397
    %v431 = vld [vmem:[#allocation8] sm:$0xff]
    %v432 = vld [vmem:[#allocation8 + $0x8] sm:$0xff]
    %v433 = vld [vmem:[#allocation8 + $0x10] sm:$0xff]
    %v434 = vld [vmem:[#allocation8 + $0x18] sm:$0xff]
    %v435 = vld [vmem:[#allocation8 + $0x20] sm:$0xff]
    %v436 = vld [vmem:[#allocation8 + $0x28] sm:$0xff]
    %v437 = vld [vmem:[#allocation8 + $0x30] sm:$0xff]
    %v438 = vld [vmem:[#allocation8 + $0x38] sm:$0xff]
    %v439 = vld [vmem:[#allocation8 + $0x40] sm:$0xff]
    %v440 = vld [vmem:[#allocation8 + $0x48] sm:$0xff]
    %v441 = vld [vmem:[#allocation8 + $0x50] sm:$0xff]
    %v442 = vld [vmem:[#allocation8 + $0x58] sm:$0xff]
    %v443 = vld [vmem:[#allocation8 + $0x60] sm:$0xff]
    %v444 = vld [vmem:[#allocation8 + $0x68] sm:$0xff]
    %v445 = vld [vmem:[#allocation8 + $0x70] sm:$0xff]
    %v446 = vld [vmem:[#allocation8 + $0x78] sm:$0xff]
    %v447 = vld [vmem:[#allocation8 + $0x80] sm:$0xff]
    %v448 = vld [vmem:[#allocation8 + $0x88] sm:$0xff]
    %v449 = vld [vmem:[#allocation8 + $0x90] sm:$0xff]
    %v450 = vld [vmem:[#allocation8 + $0x98] sm:$0xff]
    %v451 = vld [vmem:[#allocation8 + $0xa0] sm:$0xff]
    %v452 = vld [vmem:[#allocation8 + $0xa8] sm:$0xff]
    %v453 = vld [vmem:[#allocation8 + $0xb0] sm:$0xff]
    %v454 = vld [vmem:[#allocation8 + $0xb8] sm:$0xff]
    %v455 = vld [vmem:[#allocation8 + $0xc0] sm:$0xff]
    %v456 = vld [vmem:[#allocation8 + $0xc8] sm:$0xff]
    %v457 = vld [vmem:[#allocation8 + $0xd0] sm:$0xff]
    %v458 = vld [vmem:[#allocation8 + $0xd8] sm:$0xff]
    %v459 = vld [vmem:[#allocation8 + $0xe0] sm:$0xff]
    %v460 = vld [vmem:[#allocation8 + $0xe8] sm:$0xff]
    %v461 = vld [vmem:[#allocation8 + $0xf0] sm:$0xff]
    %v462 = vld [vmem:[#allocation8 + $0xf8] sm:$0xff]
    %v463 = vld [vmem:[#allocation8 + $0x100] sm:$0xff]
    %v464 = vld [vmem:[#allocation8 + $0x108] sm:$0xff]
    %v465 = vld [vmem:[#allocation8 + $0x110] sm:$0xff]
    %v466 = vld [vmem:[#allocation8 + $0x118] sm:$0xff]
    %v467 = vld [vmem:[#allocation8 + $0x120] sm:$0xff]
    %v468 = vld [vmem:[#allocation8 + $0x128] sm:$0xff]
    %v469 = vld [vmem:[#allocation8 + $0x130] sm:$0xff]
    %v470 = vld [vmem:[#allocation8 + $0x138] sm:$0xff]
    %v471 = vld [vmem:[#allocation8 + $0x140] sm:$0xff]
    %v472 = vld [vmem:[#allocation8 + $0x148] sm:$0xff]
    %v473 = vld [vmem:[#allocation8 + $0x150] sm:$0xff]
    %v474 = vld [vmem:[#allocation8 + $0x158] sm:$0xff]
    %v475 = vld [vmem:[#allocation8 + $0x160] sm:$0xff]
    %v476 = vld [vmem:[#allocation8 + $0x168] sm:$0xff]
    %v477 = vld [vmem:[#allocation8 + $0x170] sm:$0xff]
    %v478 = vld [vmem:[#allocation8 + $0x178] sm:$0xff]
    %v479 = vld [vmem:[#allocation8 + $0x180] sm:$0xff]
    %v480 = vld [vmem:[#allocation8 + $0x188] sm:$0xff]
    %v481 = vld [vmem:[#allocation8 + $0x190] sm:$0xff]
    %v482 = vld [vmem:[#allocation8 + $0x198] sm:$0xff]
    %v483 = vld [vmem:[#allocation8 + $0x1a0] sm:$0xff]
    %v484 = vld [vmem:[#allocation8 + $0x1a8] sm:$0xff]
    %v485 = vld [vmem:[#allocation8 + $0x1b0] sm:$0xff]
    %v486 = vld [vmem:[#allocation8 + $0x1b8] sm:$0xff]
    %v487 = vld [vmem:[#allocation8 + $0x1c0] sm:$0xff]
    %v488 = vld [vmem:[#allocation8 + $0x1c8] sm:$0xff]
    %v489 = vld [vmem:[#allocation8 + $0x1d0] sm:$0xff]
    %v490 = vld [vmem:[#allocation8 + $0x1d8] sm:$0xff]
    %v491 = vld [vmem:[#allocation8 + $0x1e0] sm:$0xff]
    %v492 = vld [vmem:[#allocation8 + $0x1e8] sm:$0xff]
    %v493 = vld [vmem:[#allocation8 + $0x1f0] sm:$0xff]
    %v494 = vld [vmem:[#allocation8 + $0x1f8] sm:$0xff]
    %s495 = smul.u32 0, 4
    %s496 = smul.addr %s495, 8
    %s497 = scalar_lea.vmem [#allocation2], %s496
    %v498 = vld [vmem:[%s497] sm:$0xff]
    %v499 = vld [vmem:[%s497 + $0x8] sm:$0xff]
    %v500 = vld [vmem:[%s497 + $0x10] sm:$0xff]
    %v501 = vld [vmem:[%s497 + $0x18] sm:$0xff]
    %502 = vmatprep.subr.mxu0 %v492
    %503 = vmatpush1.msra.mxu0 %v491
    %504 = vmatprep.subr.mxu0 %v488
    %505 = vmatpush1.msra.mxu0 %v487
    %506 = vmatprep.subr.mxu0 %v484
    %507 = vmatpush1.msra.mxu0 %v483
    %508 = vmatprep.subr.mxu0 %v480
    %509 = vmatpush1.msra.mxu0 %v479
    %510 = vmatprep.subr.mxu0 %v476
    %511 = vmatpush1.msra.mxu0 %v475
    %512 = vmatprep.subr.mxu0 %v472
    %513 = vmatpush1.msra.mxu0 %v471
    %514 = vmatprep.subr.mxu0 %v468
    %515 = vmatpush1.msra.mxu0 %v467
    %516 = vmatprep.subr.mxu0 %v464
    %517 = vmatpush1.msra.mxu0 %v463
    %518 = vmatprep.subr.mxu0 %v460
    %519 = vmatpush1.msra.mxu0 %v459
    %520 = vmatprep.subr.mxu0 %v456
    %521 = vmatpush1.msra.mxu0 %v455
    %522 = vmatprep.subr.mxu0 %v452
    %523 = vmatpush1.msra.mxu0 %v451
    %524 = vmatprep.subr.mxu0 %v448
    %525 = vmatpush1.msra.mxu0 %v447
    %526 = vmatprep.subr.mxu0 %v444
    %527 = vmatpush1.msra.mxu0 %v443
    %528 = vmatprep.subr.mxu0 %v440
    %529 = vmatpush1.msra.mxu0 %v439
    %530 = vmatprep.subr.mxu0 %v436
    %531 = vmatpush1.msra.mxu0 %v435
    %532 = vmatprep.subr.mxu0 %v432
    %533 = vmatpush1.msra.mxu0 %v431
    %534 = vmatprep.subr.mxu0 0.0
    %535 = vmatpush2.msra.mxu0 0.0
    %536 = vmatprep.subr.mxu0 0.0
    %537 = vmatpush2.msra.mxu0 0.0
    %538 = vmatprep.subr.mxu0 0.0
    %539 = vmatpush2.msra.mxu0 0.0
    %540 = vmatprep.subr.mxu0 0.0
    %541 = vmatpush2.msra.mxu0 0.0
    %542 = vmatprep.subr.mxu0 0.0
    %543 = vmatpush2.msra.mxu0 0.0
    %544 = vmatprep.subr.mxu0 0.0
    %545 = vmatpush2.msra.mxu0 0.0
    %546 = vmatprep.subr.mxu0 0.0
    %547 = vmatpush2.msra.mxu0 0.0
    %548 = vmatprep.subr.mxu0 0.0
    %549 = vmatpush2.msra.mxu0 0.0
    %550 = vmatprep.subr.mxu0 0.0
    %551 = vmatpush2.msra.mxu0 0.0
    %552 = vmatprep.subr.mxu0 0.0
    %553 = vmatpush2.msra.mxu0 0.0
    %554 = vmatprep.subr.mxu0 0.0
    %555 = vmatpush2.msra.mxu0 0.0
    %556 = vmatprep.subr.mxu0 0.0
    %557 = vmatpush2.msra.mxu0 0.0
    %558 = vmatprep.subr.mxu0 0.0
    %559 = vmatpush2.msra.mxu0 0.0
    %560 = vmatprep.subr.mxu0 0.0
    %561 = vmatpush2.msra.mxu0 0.0
    %562 = vmatprep.subr.mxu0 0.0
    %563 = vmatpush2.msra.mxu0 0.0
    %564 = vmatprep.subr.mxu0 0.0
    %565 = vmatpush2.msra.mxu0 0.0
    %566 = vmatprep.mubr.f32.mxu0 0.0
    %567 = vmatmul.mubr.f32.gmra.mxu0 0.0
    %v568 = vpop.f32.mrf.mxu0
    %v569 = vadd.f32 0.0, %v568
    %v570 = vpop.f32.mrf.mxu0
    %v571 = vadd.f32 0.0, %v570
    %572 = vdwg.mxu0
    %573 = vmatprep.subr.mxu0 %v494
    %574 = vmatpush1.msra.mxu0 %v493
    %575 = vmatprep.subr.mxu0 %v490
    %576 = vmatpush1.msra.mxu0 %v489
    %577 = vmatprep.subr.mxu0 %v486
    %578 = vmatpush1.msra.mxu0 %v485
    %579 = vmatprep.subr.mxu0 %v482
    %580 = vmatpush1.msra.mxu0 %v481
    %581 = vmatprep.subr.mxu0 %v478
    %582 = vmatpush1.msra.mxu0 %v477
    %583 = vmatprep.subr.mxu0 %v474
    %584 = vmatpush1.msra.mxu0 %v473
    %585 = vmatprep.subr.mxu0 %v470
    %586 = vmatpush1.msra.mxu0 %v469
    %587 = vmatprep.subr.mxu0 %v466
    %588 = vmatpush1.msra.mxu0 %v465
    %589 = vmatprep.subr.mxu0 %v462
    %590 = vmatpush1.msra.mxu0 %v461
    %591 = vmatprep.subr.mxu0 %v458
    %592 = vmatpush1.msra.mxu0 %v457
    %593 = vmatprep.subr.mxu0 %v454
    %594 = vmatpush1.msra.mxu0 %v453
    %595 = vmatprep.subr.mxu0 %v450
    %596 = vmatpush1.msra.mxu0 %v449
    %597 = vmatprep.subr.mxu0 %v446
    %598 = vmatpush1.msra.mxu0 %v445
    %599 = vmatprep.subr.mxu0 %v442
    %600 = vmatpush1.msra.mxu0 %v441
    %601 = vmatprep.subr.mxu0 %v438
    %602 = vmatpush1.msra.mxu0 %v437
    %603 = vmatprep.subr.mxu0 %v434
    %604 = vmatpush1.msra.mxu0 %v433
    %605 = vmatprep.subr.mxu0 0.0
    %606 = vmatpush2.msra.mxu0 0.0
    %607 = vmatprep.subr.mxu0 0.0
    %608 = vmatpush2.msra.mxu0 0.0
    %609 = vmatprep.subr.mxu0 0.0
    %610 = vmatpush2.msra.mxu0 0.0
    %611 = vmatprep.subr.mxu0 0.0
    %612 = vmatpush2.msra.mxu0 0.0
    %613 = vmatprep.subr.mxu0 0.0
    %614 = vmatpush2.msra.mxu0 0.0
    %615 = vmatprep.subr.mxu0 0.0
    %616 = vmatpush2.msra.mxu0 0.0
    %617 = vmatprep.subr.mxu0 0.0
    %618 = vmatpush2.msra.mxu0 0.0
    %619 = vmatprep.subr.mxu0 0.0
    %620 = vmatpush2.msra.mxu0 0.0
    %621 = vmatprep.subr.mxu0 0.0
    %622 = vmatpush2.msra.mxu0 0.0
    %623 = vmatprep.subr.mxu0 0.0
    %624 = vmatpush2.msra.mxu0 0.0
    %625 = vmatprep.subr.mxu0 0.0
    %626 = vmatpush2.msra.mxu0 0.0
    %627 = vmatprep.subr.mxu0 0.0
    %628 = vmatpush2.msra.mxu0 0.0
    %629 = vmatprep.subr.mxu0 0.0
    %630 = vmatpush2.msra.mxu0 0.0
    %631 = vmatprep.subr.mxu0 0.0
    %632 = vmatpush2.msra.mxu0 0.0
    %633 = vmatprep.subr.mxu0 0.0
    %634 = vmatpush2.msra.mxu0 0.0
    %635 = vmatprep.subr.mxu0 0.0
    %636 = vmatpush2.msra.mxu0 0.0
    %637 = vmatprep.mubr.f32.mxu0 0.0
    %638 = vmatmul.mubr.f32.gmra.mxu0 0.0
    %v639 = vpop.f32.mrf.mxu0
    %v640 = vadd.f32 0.0, %v639
    %v641 = vpop.f32.mrf.mxu0
    %v642 = vadd.f32 0.0, %v641
    %643 = vdwg.mxu0
    %v644 = vadd.f32 %v498, %v569
    %v645 = vadd.f32 %v499, %v571
    %v646 = vadd.f32 %v500, %v640
    %v647 = vadd.f32 %v501, %v642
    %v648 = vxor.u32 %v644, 2147483648
    %v649 = vmul.f32 %v648, 1.442695
    %v650 = vpow.pop %v649
    %v651 = vadd.f32 %v650, 1.0
    %v652 = vrcp.pop %v651
    %v653 = vmul.f32 1.0, %v652
    %v654 = vxor.u32 %v645, 2147483648
    %v655 = vmul.f32 %v654, 1.442695
    %v656 = vpow.pop %v655
    %v657 = vadd.f32 %v656, 1.0
    %v658 = vrcp.pop %v657
    %v659 = vmul.f32 1.0, %v658
    %v660 = vtanh.pop %v646
    %v661 = vxor.u32 %v647, 2147483648
    %v662 = vmul.f32 %v661, 1.442695
    %v663 = vpow.pop %v662
    %v664 = vadd.f32 %v663, 1.0
    %v665 = vrcp.pop %v664
    %v666 = vmul.f32 1.0, %v665
    %v667 = vmul.f32 %v659, 0.0
    %v668 = vmul.f32 %v653, %v660
    %v669 = vadd.f32 %v667, %v668
    %v670 = vtanh.pop %v669
    %v671 = vmul.f32 %v666, %v670
    %s672 = smul.u32 1, 4
    %s673 = smul.addr %s672, 8
    %s674 = scalar_lea.vmem [#allocation2], %s673
    %v675 = vld [vmem:[%s674] sm:$0xff]
    %v676 = vld [vmem:[%s674 + $0x8] sm:$0xff]
    %v677 = vld [vmem:[%s674 + $0x10] sm:$0xff]
    %v678 = vld [vmem:[%s674 + $0x18] sm:$0xff]
    %679 = vmatprep.subr.mxu0 %v492
    %680 = vmatpush1.msra.mxu0 %v491
    %681 = vmatprep.subr.mxu0 %v488
    %682 = vmatpush1.msra.mxu0 %v487
    %683 = vmatprep.subr.mxu0 %v484
    %684 = vmatpush1.msra.mxu0 %v483
    %685 = vmatprep.subr.mxu0 %v480
    %686 = vmatpush1.msra.mxu0 %v479
    %687 = vmatprep.subr.mxu0 %v476
    %688 = vmatpush1.msra.mxu0 %v475
    %689 = vmatprep.subr.mxu0 %v472
    %690 = vmatpush1.msra.mxu0 %v471
    %691 = vmatprep.subr.mxu0 %v468
    %692 = vmatpush1.msra.mxu0 %v467
    %693 = vmatprep.subr.mxu0 %v464
    %694 = vmatpush1.msra.mxu0 %v463
    %695 = vmatprep.subr.mxu0 %v460
    %696 = vmatpush1.msra.mxu0 %v459
    %697 = vmatprep.subr.mxu0 %v456
    %698 = vmatpush1.msra.mxu0 %v455
    %699 = vmatprep.subr.mxu0 %v452
    %700 = vmatpush1.msra.mxu0 %v451
    %701 = vmatprep.subr.mxu0 %v448
    %702 = vmatpush1.msra.mxu0 %v447
    %703 = vmatprep.subr.mxu0 %v444
    %704 = vmatpush1.msra.mxu0 %v443
    %705 = vmatprep.subr.mxu0 %v440
    %706 = vmatpush1.msra.mxu0 %v439
    %707 = vmatprep.subr.mxu0 %v436
    %708 = vmatpush1.msra.mxu0 %v435
    %709 = vmatprep.subr.mxu0 %v432
    %710 = vmatpush1.msra.mxu0 %v431
    %711 = vmatprep.subr.mxu0 0.0
    %712 = vmatpush2.msra.mxu0 0.0
    %713 = vmatprep.subr.mxu0 0.0
    %714 = vmatpush2.msra.mxu0 0.0
    %715 = vmatprep.subr.mxu0 0.0
    %716 = vmatpush2.msra.mxu0 0.0
    %717 = vmatprep.subr.mxu0 0.0
    %718 = vmatpush2.msra.mxu0 0.0
    %719 = vmatprep.subr.mxu0 0.0
    %720 = vmatpush2.msra.mxu0 0.0
    %721 = vmatprep.subr.mxu0 0.0
    %722 = vmatpush2.msra.mxu0 0.0
    %723 = vmatprep.subr.mxu0 0.0
    %724 = vmatpush2.msra.mxu0 0.0
    %725 = vmatprep.subr.mxu0 0.0
    %726 = vmatpush2.msra.mxu0 0.0
    %727 = vmatprep.subr.mxu0 0.0
    %728 = vmatpush2.msra.mxu0 0.0
    %729 = vmatprep.subr.mxu0 0.0
    %730 = vmatpush2.msra.mxu0 0.0
    %731 = vmatprep.subr.mxu0 0.0
    %732 = vmatpush2.msra.mxu0 0.0
    %733 = vmatprep.subr.mxu0 0.0
    %734 = vmatpush2.msra.mxu0 0.0
    %735 = vmatprep.subr.mxu0 0.0
    %736 = vmatpush2.msra.mxu0 0.0
    %737 = vmatprep.subr.mxu0 0.0
    %738 = vmatpush2.msra.mxu0 0.0
    %739 = vmatprep.subr.mxu0 0.0
    %740 = vmatpush2.msra.mxu0 0.0
    %741 = vmatprep.subr.mxu0 0.0
    %742 = vmatpush2.msra.mxu0 0.0
    %743 = vmatprep.mubr.f32.mxu0 0.0
    %744 = vmatmul.mubr.f32.gmra.mxu0 %v671
    %v745 = vpop.f32.mrf.mxu0
    %v746 = vadd.f32 0.0, %v745
    %v747 = vpop.f32.mrf.mxu0
    %v748 = vadd.f32 0.0, %v747
    %749 = vdwg.mxu0
    %750 = vmatprep.subr.mxu0 %v494
    %751 = vmatpush1.msra.mxu0 %v493
    %752 = vmatprep.subr.mxu0 %v490
    %753 = vmatpush1.msra.mxu0 %v489
    %754 = vmatprep.subr.mxu0 %v486
    %755 = vmatpush1.msra.mxu0 %v485
    %756 = vmatprep.subr.mxu0 %v482
    %757 = vmatpush1.msra.mxu0 %v481
    %758 = vmatprep.subr.mxu0 %v478
    %759 = vmatpush1.msra.mxu0 %v477
    %760 = vmatprep.subr.mxu0 %v474
    %761 = vmatpush1.msra.mxu0 %v473
    %762 = vmatprep.subr.mxu0 %v470
    %763 = vmatpush1.msra.mxu0 %v469
    %764 = vmatprep.subr.mxu0 %v466
    %765 = vmatpush1.msra.mxu0 %v465
    %766 = vmatprep.subr.mxu0 %v462
    %767 = vmatpush1.msra.mxu0 %v461
    %768 = vmatprep.subr.mxu0 %v458
    %769 = vmatpush1.msra.mxu0 %v457
    %770 = vmatprep.subr.mxu0 %v454
    %771 = vmatpush1.msra.mxu0 %v453
    %772 = vmatprep.subr.mxu0 %v450
    %773 = vmatpush1.msra.mxu0 %v449
    %774 = vmatprep.subr.mxu0 %v446
    %775 = vmatpush1.msra.mxu0 %v445
    %776 = vmatprep.subr.mxu0 %v442
    %777 = vmatpush1.msra.mxu0 %v441
    %778 = vmatprep.subr.mxu0 %v438
    %779 = vmatpush1.msra.mxu0 %v437
    %780 = vmatprep.subr.mxu0 %v434
    %781 = vmatpush1.msra.mxu0 %v433
    %782 = vmatprep.subr.mxu0 0.0
    %783 = vmatpush2.msra.mxu0 0.0
    %784 = vmatprep.subr.mxu0 0.0
    %785 = vmatpush2.msra.mxu0 0.0
    %786 = vmatprep.subr.mxu0 0.0
    %787 = vmatpush2.msra.mxu0 0.0
    %788 = vmatprep.subr.mxu0 0.0
    %789 = vmatpush2.msra.mxu0 0.0
    %790 = vmatprep.subr.mxu0 0.0
    %791 = vmatpush2.msra.mxu0 0.0
    %792 = vmatprep.subr.mxu0 0.0
    %793 = vmatpush2.msra.mxu0 0.0
    %794 = vmatprep.subr.mxu0 0.0
    %795 = vmatpush2.msra.mxu0 0.0
    %796 = vmatprep.subr.mxu0 0.0
    %797 = vmatpush2.msra.mxu0 0.0
    %798 = vmatprep.subr.mxu0 0.0
    %799 = vmatpush2.msra.mxu0 0.0
    %800 = vmatprep.subr.mxu0 0.0
    %801 = vmatpush2.msra.mxu0 0.0
    %802 = vmatprep.subr.mxu0 0.0
    %803 = vmatpush2.msra.mxu0 0.0
    %804 = vmatprep.subr.mxu0 0.0
    %805 = vmatpush2.msra.mxu0 0.0
    %806 = vmatprep.subr.mxu0 0.0
    %807 = vmatpush2.msra.mxu0 0.0
    %808 = vmatprep.subr.mxu0 0.0
    %809 = vmatpush2.msra.mxu0 0.0
    %810 = vmatprep.subr.mxu0 0.0
    %811 = vmatpush2.msra.mxu0 0.0
    %812 = vmatprep.subr.mxu0 0.0
    %813 = vmatpush2.msra.mxu0 0.0
    %814 = vmatprep.mubr.f32.mxu0 0.0
    %815 = vmatmul.mubr.f32.gmra.mxu0 %v671
    %v816 = vpop.f32.mrf.mxu0
    %v817 = vadd.f32 0.0, %v816
    %v818 = vpop.f32.mrf.mxu0
    %v819 = vadd.f32 0.0, %v818
    %820 = vdwg.mxu0
    %v821 = vadd.f32 %v675, %v746
    %v822 = vadd.f32 %v676, %v748
    %v823 = vadd.f32 %v677, %v817
    %v824 = vadd.f32 %v678, %v819
    %v825 = vxor.u32 %v821, 2147483648
    %v826 = vmul.f32 %v825, 1.442695
    %v827 = vpow.pop %v826
    %v828 = vadd.f32 %v827, 1.0
    %v829 = vrcp.pop %v828
    %v830 = vmul.f32 1.0, %v829
    %v831 = vxor.u32 %v822, 2147483648
    %v832 = vmul.f32 %v831, 1.442695
    %v833 = vpow.pop %v832
    %v834 = vadd.f32 %v833, 1.0
    %v835 = vrcp.pop %v834
    %v836 = vmul.f32 1.0, %v835
    %v837 = vtanh.pop %v823
    %v838 = vxor.u32 %v824, 2147483648
    %v839 = vmul.f32 %v838, 1.442695
    %v840 = vpow.pop %v839
    %v841 = vadd.f32 %v840, 1.0
    %v842 = vrcp.pop %v841
    %v843 = vmul.f32 1.0, %v842
    %v844 = vmul.f32 %v836, %v669
    %v845 = vmul.f32 %v830, %v837
    %v846 = vadd.f32 %v844, %v845
    %v847 = vtanh.pop %v846
    %v848 = vmul.f32 %v843, %v847
    %s849 = smul.u32 2, 4
    %s850 = smul.addr %s849, 8
    %s851 = scalar_lea.vmem [#allocation2], %s850
    %v852 = vld [vmem:[%s851] sm:$0xff]
    %v853 = vld [vmem:[%s851 + $0x8] sm:$0xff]
    %v854 = vld [vmem:[%s851 + $0x10] sm:$0xff]
    %v855 = vld [vmem:[%s851 + $0x18] sm:$0xff]
    %856 = vmatprep.subr.mxu0 %v492
    %857 = vmatpush1.msra.mxu0 %v491
    %858 = vmatprep.subr.mxu0 %v488
    %859 = vmatpush1.msra.mxu0 %v487
    %860 = vmatprep.subr.mxu0 %v484
    %861 = vmatpush1.msra.mxu0 %v483
    %862 = vmatprep.subr.mxu0 %v480
    %863 = vmatpush1.msra.mxu0 %v479
    %864 = vmatprep.subr.mxu0 %v476
    %865 = vmatpush1.msra.mxu0 %v475
    %866 = vmatprep.subr.mxu0 %v472
    %867 = vmatpush1.msra.mxu0 %v471
    %868 = vmatprep.subr.mxu0 %v468
    %869 = vmatpush1.msra.mxu0 %v467
    %870 = vmatprep.subr.mxu0 %v464
    %871 = vmatpush1.msra.mxu0 %v463
    %872 = vmatprep.subr.mxu0 %v460
    %873 = vmatpush1.msra.mxu0 %v459
    %874 = vmatprep.subr.mxu0 %v456
    %875 = vmatpush1.msra.mxu0 %v455
    %876 = vmatprep.subr.mxu0 %v452
    %877 = vmatpush1.msra.mxu0 %v451
    %878 = vmatprep.subr.mxu0 %v448
    %879 = vmatpush1.msra.mxu0 %v447
    %880 = vmatprep.subr.mxu0 %v444
    %881 = vmatpush1.msra.mxu0 %v443
    %882 = vmatprep.subr.mxu0 %v440
    %883 = vmatpush1.msra.mxu0 %v439
    %884 = vmatprep.subr.mxu0 %v436
    %885 = vmatpush1.msra.mxu0 %v435
    %886 = vmatprep.subr.mxu0 %v432
    %887 = vmatpush1.msra.mxu0 %v431
    %888 = vmatprep.subr.mxu0 0.0
    %889 = vmatpush2.msra.mxu0 0.0
    %890 = vmatprep.subr.mxu0 0.0
    %891 = vmatpush2.msra.mxu0 0.0
    %892 = vmatprep.subr.mxu0 0.0
    %893 = vmatpush2.msra.mxu0 0.0
    %894 = vmatprep.subr.mxu0 0.0
    %895 = vmatpush2.msra.mxu0 0.0
    %896 = vmatprep.subr.mxu0 0.0
    %897 = vmatpush2.msra.mxu0 0.0
    %898 = vmatprep.subr.mxu0 0.0
    %899 = vmatpush2.msra.mxu0 0.0
    %900 = vmatprep.subr.mxu0 0.0
    %901 = vmatpush2.msra.mxu0 0.0
    %902 = vmatprep.subr.mxu0 0.0
    %903 = vmatpush2.msra.mxu0 0.0
    %904 = vmatprep.subr.mxu0 0.0
    %905 = vmatpush2.msra.mxu0 0.0
    %906 = vmatprep.subr.mxu0 0.0
    %907 = vmatpush2.msra.mxu0 0.0
    %908 = vmatprep.subr.mxu0 0.0
    %909 = vmatpush2.msra.mxu0 0.0
    %910 = vmatprep.subr.mxu0 0.0
    %911 = vmatpush2.msra.mxu0 0.0
    %912 = vmatprep.subr.mxu0 0.0
    %913 = vmatpush2.msra.mxu0 0.0
    %914 = vmatprep.subr.mxu0 0.0
    %915 = vmatpush2.msra.mxu0 0.0
    %916 = vmatprep.subr.mxu0 0.0
    %917 = vmatpush2.msra.mxu0 0.0
    %918 = vmatprep.subr.mxu0 0.0
    %919 = vmatpush2.msra.mxu0 0.0
    %920 = vmatprep.mubr.f32.mxu0 0.0
    %921 = vmatmul.mubr.f32.gmra.mxu0 %v848
    %v922 = vpop.f32.mrf.mxu0
    %v923 = vadd.f32 0.0, %v922
    %v924 = vpop.f32.mrf.mxu0
    %v925 = vadd.f32 0.0, %v924
    %926 = vdwg.mxu0
    %927 = vmatprep.subr.mxu0 %v494
    %928 = vmatpush1.msra.mxu0 %v493
    %929 = vmatprep.subr.mxu0 %v490
    %930 = vmatpush1.msra.mxu0 %v489
    %931 = vmatprep.subr.mxu0 %v486
    %932 = vmatpush1.msra.mxu0 %v485
    %933 = vmatprep.subr.mxu0 %v482
    %934 = vmatpush1.msra.mxu0 %v481
    %935 = vmatprep.subr.mxu0 %v478
    %936 = vmatpush1.msra.mxu0 %v477
    %937 = vmatprep.subr.mxu0 %v474
    %938 = vmatpush1.msra.mxu0 %v473
    %939 = vmatprep.subr.mxu0 %v470
    %940 = vmatpush1.msra.mxu0 %v469
    %941 = vmatprep.subr.mxu0 %v466
    %942 = vmatpush1.msra.mxu0 %v465
    %943 = vmatprep.subr.mxu0 %v462
    %944 = vmatpush1.msra.mxu0 %v461
    %945 = vmatprep.subr.mxu0 %v458
    %946 = vmatpush1.msra.mxu0 %v457
    %947 = vmatprep.subr.mxu0 %v454
    %948 = vmatpush1.msra.mxu0 %v453
    %949 = vmatprep.subr.mxu0 %v450
    %950 = vmatpush1.msra.mxu0 %v449
    %951 = vmatprep.subr.mxu0 %v446
    %952 = vmatpush1.msra.mxu0 %v445
    %953 = vmatprep.subr.mxu0 %v442
    %954 = vmatpush1.msra.mxu0 %v441
    %955 = vmatprep.subr.mxu0 %v438
    %956 = vmatpush1.msra.mxu0 %v437
    %957 = vmatprep.subr.mxu0 %v434
    %958 = vmatpush1.msra.mxu0 %v433
    %959 = vmatprep.subr.mxu0 0.0
    %960 = vmatpush2.msra.mxu0 0.0
    %961 = vmatprep.subr.mxu0 0.0
    %962 = vmatpush2.msra.mxu0 0.0
    %963 = vmatprep.subr.mxu0 0.0
    %964 = vmatpush2.msra.mxu0 0.0
    %965 = vmatprep.subr.mxu0 0.0
    %966 = vmatpush2.msra.mxu0 0.0
    %967 = vmatprep.subr.mxu0 0.0
    %968 = vmatpush2.msra.mxu0 0.0
    %969 = vmatprep.subr.mxu0 0.0
    %970 = vmatpush2.msra.mxu0 0.0
    %971 = vmatprep.subr.mxu0 0.0
    %972 = vmatpush2.msra.mxu0 0.0
    %973 = vmatprep.subr.mxu0 0.0
    %974 = vmatpush2.msra.mxu0 0.0
    %975 = vmatprep.subr.mxu0 0.0
    %976 = vmatpush2.msra.mxu0 0.0
    %977 = vmatprep.subr.mxu0 0.0
    %978 = vmatpush2.msra.mxu0 0.0
    %979 = vmatprep.subr.mxu0 0.0
    %980 = vmatpush2.msra.mxu0 0.0
    %981 = vmatprep.subr.mxu0 0.0
    %982 = vmatpush2.msra.mxu0 0.0
    %983 = vmatprep.subr.mxu0 0.0
    %984 = vmatpush2.msra.mxu0 0.0
    %985 = vmatprep.subr.mxu0 0.0
    %986 = vmatpush2.msra.mxu0 0.0
    %987 = vmatprep.subr.mxu0 0.0
    %988 = vmatpush2.msra.mxu0 0.0
    %989 = vmatprep.subr.mxu0 0.0
    %990 = vmatpush2.msra.mxu0 0.0
    %991 = vmatprep.mubr.f32.mxu0 0.0
    %992 = vmatmul.mubr.f32.gmra.mxu0 %v848
    %v993 = vpop.f32.mrf.mxu0
    %v994 = vadd.f32 0.0, %v993
    %v995 = vpop.f32.mrf.mxu0
    %v996 = vadd.f32 0.0, %v995
    %997 = vdwg.mxu0
    %v998 = vadd.f32 %v852, %v923
    %v999 = vadd.f32 %v853, %v925
    %v1000 = vadd.f32 %v854, %v994
    %v1001 = vadd.f32 %v855, %v996
    %v1002 = vxor.u32 %v998, 2147483648
    %v1003 = vmul.f32 %v1002, 1.442695
    %v1004 = vpow.pop %v1003
    %v1005 = vadd.f32 %v1004, 1.0
    %v1006 = vrcp.pop %v1005
    %v1007 = vmul.f32 1.0, %v1006
    %v1008 = vxor.u32 %v999, 2147483648
    %v1009 = vmul.f32 %v1008, 1.442695
    %v1010 = vpow.pop %v1009
    %v1011 = vadd.f32 %v1010, 1.0
    %v1012 = vrcp.pop %v1011
    %v1013 = vmul.f32 1.0, %v1012
    %v1014 = vtanh.pop %v1000
    %v1015 = vxor.u32 %v1001, 2147483648
    %v1016 = vmul.f32 %v1015, 1.442695
    %v1017 = vpow.pop %v1016
    %v1018 = vadd.f32 %v1017, 1.0
    %v1019 = vrcp.pop %v1018
    %v1020 = vmul.f32 1.0, %v1019
    %v1021 = vmul.f32 %v1013, %v846
    %v1022 = vmul.f32 %v1007, %v1014
    %v1023 = vadd.f32 %v1021, %v1022
    %v1024 = vtanh.pop %v1023
    %v1025 = vmul.f32 %v1020, %v1024
    %s1026 = smul.u32 3, 4
    %s1027 = smul.addr %s1026, 8
    %s1028 = scalar_lea.vmem [#allocation2], %s1027
    %v1029 = vld [vmem:[%s1028] sm:$0xff]
    %v1030 = vld [vmem:[%s1028 + $0x8] sm:$0xff]
    %v1031 = vld [vmem:[%s1028 + $0x10] sm:$0xff]
    %v1032 = vld [vmem:[%s1028 + $0x18] sm:$0xff]
    %1033 = vmatprep.subr.mxu0 %v492
    %1034 = vmatpush1.msra.mxu0 %v491
    %1035 = vmatprep.subr.mxu0 %v488
    %1036 = vmatpush1.msra.mxu0 %v487
    %1037 = vmatprep.subr.mxu0 %v484
    %1038 = vmatpush1.msra.mxu0 %v483
    %1039 = vmatprep.subr.mxu0 %v480
    %1040 = vmatpush1.msra.mxu0 %v479
    %1041 = vmatprep.subr.mxu0 %v476
    %1042 = vmatpush1.msra.mxu0 %v475
    %1043 = vmatprep.subr.mxu0 %v472
    %1044 = vmatpush1.msra.mxu0 %v471
    %1045 = vmatprep.subr.mxu0 %v468
    %1046 = vmatpush1.msra.mxu0 %v467
    %1047 = vmatprep.subr.mxu0 %v464
    %1048 = vmatpush1.msra.mxu0 %v463
    %1049 = vmatprep.subr.mxu0 %v460
    %1050 = vmatpush1.msra.mxu0 %v459
    %1051 = vmatprep.subr.mxu0 %v456
    %1052 = vmatpush1.msra.mxu0 %v455
    %1053 = vmatprep.subr.mxu0 %v452
    %1054 = vmatpush1.msra.mxu0 %v451
    %1055 = vmatprep.subr.mxu0 %v448
    %1056 = vmatpush1.msra.mxu0 %v447
    %1057 = vmatprep.subr.mxu0 %v444
    %1058 = vmatpush1.msra.mxu0 %v443
    %1059 = vmatprep.subr.mxu0 %v440
    %1060 = vmatpush1.msra.mxu0 %v439
    %1061 = vmatprep.subr.mxu0 %v436
    %1062 = vmatpush1.msra.mxu0 %v435
    %1063 = vmatprep.subr.mxu0 %v432
    %1064 = vmatpush1.msra.mxu0 %v431
    %1065 = vmatprep.subr.mxu0 0.0
    %1066 = vmatpush2.msra.mxu0 0.0
    %1067 = vmatprep.subr.mxu0 0.0
    %1068 = vmatpush2.msra.mxu0 0.0
    %1069 = vmatprep.subr.mxu0 0.0
    %1070 = vmatpush2.msra.mxu0 0.0
    %1071 = vmatprep.subr.mxu0 0.0
    %1072 = vmatpush2.msra.mxu0 0.0
    %1073 = vmatprep.subr.mxu0 0.0
    %1074 = vmatpush2.msra.mxu0 0.0
    %1075 = vmatprep.subr.mxu0 0.0
    %1076 = vmatpush2.msra.mxu0 0.0
    %1077 = vmatprep.subr.mxu0 0.0
    %1078 = vmatpush2.msra.mxu0 0.0
    %1079 = vmatprep.subr.mxu0 0.0
    %1080 = vmatpush2.msra.mxu0 0.0
    %1081 = vmatprep.subr.mxu0 0.0
    %1082 = vmatpush2.msra.mxu0 0.0
    %1083 = vmatprep.subr.mxu0 0.0
    %1084 = vmatpush2.msra.mxu0 0.0
    %1085 = vmatprep.subr.mxu0 0.0
    %1086 = vmatpush2.msra.mxu0 0.0
    %1087 = vmatprep.subr.mxu0 0.0
    %1088 = vmatpush2.msra.mxu0 0.0
    %1089 = vmatprep.subr.mxu0 0.0
    %1090 = vmatpush2.msra.mxu0 0.0
    %1091 = vmatprep.subr.mxu0 0.0
    %1092 = vmatpush2.msra.mxu0 0.0
    %1093 = vmatprep.subr.mxu0 0.0
    %1094 = vmatpush2.msra.mxu0 0.0
    %1095 = vmatprep.subr.mxu0 0.0
    %1096 = vmatpush2.msra.mxu0 0.0
    %1097 = vmatprep.mubr.f32.mxu0 0.0
    %1098 = vmatmul.mubr.f32.gmra.mxu0 %v1025
    %v1099 = vpop.f32.mrf.mxu0
    %v1100 = vadd.f32 0.0, %v1099
    %v1101 = vpop.f32.mrf.mxu0
    %v1102 = vadd.f32 0.0, %v1101
    %1103 = vdwg.mxu0
    %1104 = vmatprep.subr.mxu0 %v494
    %1105 = vmatpush1.msra.mxu0 %v493
    %1106 = vmatprep.subr.mxu0 %v490
    %1107 = vmatpush1.msra.mxu0 %v489
    %1108 = vmatprep.subr.mxu0 %v486
    %1109 = vmatpush1.msra.mxu0 %v485
    %1110 = vmatprep.subr.mxu0 %v482
    %1111 = vmatpush1.msra.mxu0 %v481
    %1112 = vmatprep.subr.mxu0 %v478
    %1113 = vmatpush1.msra.mxu0 %v477
    %1114 = vmatprep.subr.mxu0 %v474
    %1115 = vmatpush1.msra.mxu0 %v473
    %1116 = vmatprep.subr.mxu0 %v470
    %1117 = vmatpush1.msra.mxu0 %v469
    %1118 = vmatprep.subr.mxu0 %v466
    %1119 = vmatpush1.msra.mxu0 %v465
    %1120 = vmatprep.subr.mxu0 %v462
    %1121 = vmatpush1.msra.mxu0 %v461
    %1122 = vmatprep.subr.mxu0 %v458
    %1123 = vmatpush1.msra.mxu0 %v457
    %1124 = vmatprep.subr.mxu0 %v454
    %1125 = vmatpush1.msra.mxu0 %v453
    %1126 = vmatprep.subr.mxu0 %v450
    %1127 = vmatpush1.msra.mxu0 %v449
    %1128 = vmatprep.subr.mxu0 %v446
    %1129 = vmatpush1.msra.mxu0 %v445
    %1130 = vmatprep.subr.mxu0 %v442
    %1131 = vmatpush1.msra.mxu0 %v441
    %1132 = vmatprep.subr.mxu0 %v438
    %1133 = vmatpush1.msra.mxu0 %v437
    %1134 = vmatprep.subr.mxu0 %v434
    %1135 = vmatpush1.msra.mxu0 %v433
    %1136 = vmatprep.subr.mxu0 0.0
    %1137 = vmatpush2.msra.mxu0 0.0
    %1138 = vmatprep.subr.mxu0 0.0
    %1139 = vmatpush2.msra.mxu0 0.0
    %1140 = vmatprep.subr.mxu0 0.0
    %1141 = vmatpush2.msra.mxu0 0.0
    %1142 = vmatprep.subr.mxu0 0.0
    %1143 = vmatpush2.msra.mxu0 0.0
    %1144 = vmatprep.subr.mxu0 0.0
    %1145 = vmatpush2.msra.mxu0 0.0
    %1146 = vmatprep.subr.mxu0 0.0
    %1147 = vmatpush2.msra.mxu0 0.0
    %1148 = vmatprep.subr.mxu0 0.0
    %1149 = vmatpush2.msra.mxu0 0.0
    %1150 = vmatprep.subr.mxu0 0.0
    %1151 = vmatpush2.msra.mxu0 0.0
    %1152 = vmatprep.subr.mxu0 0.0
    %1153 = vmatpush2.msra.mxu0 0.0
    %1154 = vmatprep.subr.mxu0 0.0
    %1155 = vmatpush2.msra.mxu0 0.0
    %1156 = vmatprep.subr.mxu0 0.0
    %1157 = vmatpush2.msra.mxu0 0.0
    %1158 = vmatprep.subr.mxu0 0.0
    %1159 = vmatpush2.msra.mxu0 0.0
    %1160 = vmatprep.subr.mxu0 0.0
    %1161 = vmatpush2.msra.mxu0 0.0
    %1162 = vmatprep.subr.mxu0 0.0
    %1163 = vmatpush2.msra.mxu0 0.0
    %1164 = vmatprep.subr.mxu0 0.0
    %1165 = vmatpush2.msra.mxu0 0.0
    %1166 = vmatprep.subr.mxu0 0.0
    %1167 = vmatpush2.msra.mxu0 0.0
    %1168 = vmatprep.mubr.f32.mxu0 0.0
    %1169 = vmatmul.mubr.f32.gmra.mxu0 %v1025
    %v1170 = vpop.f32.mrf.mxu0
    %v1171 = vadd.f32 0.0, %v1170
    %v1172 = vpop.f32.mrf.mxu0
    %v1173 = vadd.f32 0.0, %v1172
    %1174 = vdwg.mxu0
    %v1175 = vadd.f32 %v1029, %v1100
    %v1176 = vadd.f32 %v1030, %v1102
    %v1177 = vadd.f32 %v1031, %v1171
    %v1178 = vadd.f32 %v1032, %v1173
    %v1179 = vxor.u32 %v1175, 2147483648
    %v1180 = vmul.f32 %v1179, 1.442695
    %v1181 = vpow.pop %v1180
    %v1182 = vadd.f32 %v1181, 1.0
    %v1183 = vrcp.pop %v1182
    %v1184 = vmul.f32 1.0, %v1183
    %v1185 = vxor.u32 %v1176, 2147483648
    %v1186 = vmul.f32 %v1185, 1.442695
    %v1187 = vpow.pop %v1186
    %v1188 = vadd.f32 %v1187, 1.0
    %v1189 = vrcp.pop %v1188
    %v1190 = vmul.f32 1.0, %v1189
    %v1191 = vtanh.pop %v1177
    %v1192 = vxor.u32 %v1178, 2147483648
    %v1193 = vmul.f32 %v1192, 1.442695
    %v1194 = vpow.pop %v1193
    %v1195 = vadd.f32 %v1194, 1.0
    %v1196 = vrcp.pop %v1195
    %v1197 = vmul.f32 1.0, %v1196
    %v1198 = vmul.f32 %v1190, %v1023
    %v1199 = vmul.f32 %v1184, %v1191
    %v1200 = vadd.f32 %v1198, %v1199
    %v1201 = vtanh.pop %v1200
    %v1202 = vmul.f32 %v1197, %v1201
    %s1203 = smul.u32 4, 4
    %s1204 = smul.addr %s1203, 8
    %s1205 = scalar_lea.vmem [#allocation2], %s1204
    %v1206 = vld [vmem:[%s1205] sm:$0xff]
    %v1207 = vld [vmem:[%s1205 + $0x8] sm:$0xff]
    %v1208 = vld [vmem:[%s1205 + $0x10] sm:$0xff]
    %v1209 = vld [vmem:[%s1205 + $0x18] sm:$0xff]
    %1210 = vmatprep.subr.mxu0 %v492
    %1211 = vmatpush1.msra.mxu0 %v491
    %1212 = vmatprep.subr.mxu0 %v488
    %1213 = vmatpush1.msra.mxu0 %v487
    %1214 = vmatprep.subr.mxu0 %v484
    %1215 = vmatpush1.msra.mxu0 %v483
    %1216 = vmatprep.subr.mxu0 %v480
    %1217 = vmatpush1.msra.mxu0 %v479
    %1218 = vmatprep.subr.mxu0 %v476
    %1219 = vmatpush1.msra.mxu0 %v475
    %1220 = vmatprep.subr.mxu0 %v472
    %1221 = vmatpush1.msra.mxu0 %v471
    %1222 = vmatprep.subr.mxu0 %v468
    %1223 = vmatpush1.msra.mxu0 %v467
    %1224 = vmatprep.subr.mxu0 %v464
    %1225 = vmatpush1.msra.mxu0 %v463
    %1226 = vmatprep.subr.mxu0 %v460
    %1227 = vmatpush1.msra.mxu0 %v459
    %1228 = vmatprep.subr.mxu0 %v456
    %1229 = vmatpush1.msra.mxu0 %v455
    %1230 = vmatprep.subr.mxu0 %v452
    %1231 = vmatpush1.msra.mxu0 %v451
    %1232 = vmatprep.subr.mxu0 %v448
    %1233 = vmatpush1.msra.mxu0 %v447
    %1234 = vmatprep.subr.mxu0 %v444
    %1235 = vmatpush1.msra.mxu0 %v443
    %1236 = vmatprep.subr.mxu0 %v440
    %1237 = vmatpush1.msra.mxu0 %v439
    %1238 = vmatprep.subr.mxu0 %v436
    %1239 = vmatpush1.msra.mxu0 %v435
    %1240 = vmatprep.subr.mxu0 %v432
    %1241 = vmatpush1.msra.mxu0 %v431
    %1242 = vmatprep.subr.mxu0 0.0
    %1243 = vmatpush2.msra.mxu0 0.0
    %1244 = vmatprep.subr.mxu0 0.0
    %1245 = vmatpush2.msra.mxu0 0.0
    %1246 = vmatprep.subr.mxu0 0.0
    %1247 = vmatpush2.msra.mxu0 0.0
    %1248 = vmatprep.subr.mxu0 0.0
    %1249 = vmatpush2.msra.mxu0 0.0
    %1250 = vmatprep.subr.mxu0 0.0
    %1251 = vmatpush2.msra.mxu0 0.0
    %1252 = vmatprep.subr.mxu0 0.0
    %1253 = vmatpush2.msra.mxu0 0.0
    %1254 = vmatprep.subr.mxu0 0.0
    %1255 = vmatpush2.msra.mxu0 0.0
    %1256 = vmatprep.subr.mxu0 0.0
    %1257 = vmatpush2.msra.mxu0 0.0
    %1258 = vmatprep.subr.mxu0 0.0
    %1259 = vmatpush2.msra.mxu0 0.0
    %1260 = vmatprep.subr.mxu0 0.0
    %1261 = vmatpush2.msra.mxu0 0.0
    %1262 = vmatprep.subr.mxu0 0.0
    %1263 = vmatpush2.msra.mxu0 0.0
    %1264 = vmatprep.subr.mxu0 0.0
    %1265 = vmatpush2.msra.mxu0 0.0
    %1266 = vmatprep.subr.mxu0 0.0
    %1267 = vmatpush2.msra.mxu0 0.0
    %1268 = vmatprep.subr.mxu0 0.0
    %1269 = vmatpush2.msra.mxu0 0.0
    %1270 = vmatprep.subr.mxu0 0.0
    %1271 = vmatpush2.msra.mxu0 0.0
    %1272 = vmatprep.subr.mxu0 0.0
    %1273 = vmatpush2.msra.mxu0 0.0
    %1274 = vmatprep.mubr.f32.mxu0 0.0
    %1275 = vmatmul.mubr.f32.gmra.mxu0 %v1202
    %v1276 = vpop.f32.mrf.mxu0
    %v1277 = vadd.f32 0.0, %v1276
    %v1278 = vpop.f32.mrf.mxu0
    %v1279 = vadd.f32 0.0, %v1278
    %1280 = vdwg.mxu0
    %1281 = vmatprep.subr.mxu0 %v494
    %1282 = vmatpush1.msra.mxu0 %v493
    %1283 = vmatprep.subr.mxu0 %v490
    %1284 = vmatpush1.msra.mxu0 %v489
    %1285 = vmatprep.subr.mxu0 %v486
    %1286 = vmatpush1.msra.mxu0 %v485
    %1287 = vmatprep.subr.mxu0 %v482
    %1288 = vmatpush1.msra.mxu0 %v481
    %1289 = vmatprep.subr.mxu0 %v478
    %1290 = vmatpush1.msra.mxu0 %v477
    %1291 = vmatprep.subr.mxu0 %v474
    %1292 = vmatpush1.msra.mxu0 %v473
    %1293 = vmatprep.subr.mxu0 %v470
    %1294 = vmatpush1.msra.mxu0 %v469
    %1295 = vmatprep.subr.mxu0 %v466
    %1296 = vmatpush1.msra.mxu0 %v465
    %1297 = vmatprep.subr.mxu0 %v462
    %1298 = vmatpush1.msra.mxu0 %v461
    %1299 = vmatprep.subr.mxu0 %v458
    %1300 = vmatpush1.msra.mxu0 %v457
    %1301 = vmatprep.subr.mxu0 %v454
    %1302 = vmatpush1.msra.mxu0 %v453
    %1303 = vmatprep.subr.mxu0 %v450
    %1304 = vmatpush1.msra.mxu0 %v449
    %1305 = vmatprep.subr.mxu0 %v446
    %1306 = vmatpush1.msra.mxu0 %v445
    %1307 = vmatprep.subr.mxu0 %v442
    %1308 = vmatpush1.msra.mxu0 %v441
    %1309 = vmatprep.subr.mxu0 %v438
    %1310 = vmatpush1.msra.mxu0 %v437
    %1311 = vmatprep.subr.mxu0 %v434
    %1312 = vmatpush1.msra.mxu0 %v433
    %1313 = vmatprep.subr.mxu0 0.0
    %1314 = vmatpush2.msra.mxu0 0.0
    %1315 = vmatprep.subr.mxu0 0.0
    %1316 = vmatpush2.msra.mxu0 0.0
    %1317 = vmatprep.subr.mxu0 0.0
    %1318 = vmatpush2.msra.mxu0 0.0
    %1319 = vmatprep.subr.mxu0 0.0
    %1320 = vmatpush2.msra.mxu0 0.0
    %1321 = vmatprep.subr.mxu0 0.0
    %1322 = vmatpush2.msra.mxu0 0.0
    %1323 = vmatprep.subr.mxu0 0.0
    %1324 = vmatpush2.msra.mxu0 0.0
    %1325 = vmatprep.subr.mxu0 0.0
    %1326 = vmatpush2.msra.mxu0 0.0
    %1327 = vmatprep.subr.mxu0 0.0
    %1328 = vmatpush2.msra.mxu0 0.0
    %1329 = vmatprep.subr.mxu0 0.0
    %1330 = vmatpush2.msra.mxu0 0.0
    %1331 = vmatprep.subr.mxu0 0.0
    %1332 = vmatpush2.msra.mxu0 0.0
    %1333 = vmatprep.subr.mxu0 0.0
    %1334 = vmatpush2.msra.mxu0 0.0
    %1335 = vmatprep.subr.mxu0 0.0
    %1336 = vmatpush2.msra.mxu0 0.0
    %1337 = vmatprep.subr.mxu0 0.0
    %1338 = vmatpush2.msra.mxu0 0.0
    %1339 = vmatprep.subr.mxu0 0.0
    %1340 = vmatpush2.msra.mxu0 0.0
    %1341 = vmatprep.subr.mxu0 0.0
    %1342 = vmatpush2.msra.mxu0 0.0
    %1343 = vmatprep.subr.mxu0 0.0
    %1344 = vmatpush2.msra.mxu0 0.0
    %1345 = vmatprep.mubr.f32.mxu0 0.0
    %1346 = vmatmul.mubr.f32.gmra.mxu0 %v1202
    %v1347 = vpop.f32.mrf.mxu0
    %v1348 = vadd.f32 0.0, %v1347
    %v1349 = vpop.f32.mrf.mxu0
    %v1350 = vadd.f32 0.0, %v1349
    %1351 = vdwg.mxu0
    %v1352 = vadd.f32 %v1206, %v1277
    %v1353 = vadd.f32 %v1207, %v1279
    %v1354 = vadd.f32 %v1208, %v1348
    %v1355 = vadd.f32 %v1209, %v1350
    %v1356 = vxor.u32 %v1352, 2147483648
    %v1357 = vmul.f32 %v1356, 1.442695
    %v1358 = vpow.pop %v1357
    %v1359 = vadd.f32 %v1358, 1.0
    %v1360 = vrcp.pop %v1359
    %v1361 = vmul.f32 1.0, %v1360
    %v1362 = vxor.u32 %v1353, 2147483648
    %v1363 = vmul.f32 %v1362, 1.442695
    %v1364 = vpow.pop %v1363
    %v1365 = vadd.f32 %v1364, 1.0
    %v1366 = vrcp.pop %v1365
    %v1367 = vmul.f32 1.0, %v1366
    %v1368 = vtanh.pop %v1354
    %v1369 = vxor.u32 %v1355, 2147483648
    %v1370 = vmul.f32 %v1369, 1.442695
    %v1371 = vpow.pop %v1370
    %v1372 = vadd.f32 %v1371, 1.0
    %v1373 = vrcp.pop %v1372
    %v1374 = vmul.f32 1.0, %v1373
    %v1375 = vmul.f32 %v1367, %v1200
    %v1376 = vmul.f32 %v1361, %v1368
    %v1377 = vadd.f32 %v1375, %v1376
    %v1378 = vtanh.pop %v1377
    %v1379 = vmul.f32 %v1374, %v1378
    %s1380 = smul.u32 5, 4
    %s1381 = smul.addr %s1380, 8
    %s1382 = scalar_lea.vmem [#allocation2], %s1381
    %v1383 = vld [vmem:[%s1382] sm:$0xff]
    %v1384 = vld [vmem:[%s1382 + $0x8] sm:$0xff]
    %v1385 = vld [vmem:[%s1382 + $0x10] sm:$0xff]
    %v1386 = vld [vmem:[%s1382 + $0x18] sm:$0xff]
    %1387 = vmatprep.subr.mxu0 %v492
    %1388 = vmatpush1.msra.mxu0 %v491
    %1389 = vmatprep.subr.mxu0 %v488
    %1390 = vmatpush1.msra.mxu0 %v487
    %1391 = vmatprep.subr.mxu0 %v484
    %1392 = vmatpush1.msra.mxu0 %v483
    %1393 = vmatprep.subr.mxu0 %v480
    %1394 = vmatpush1.msra.mxu0 %v479
    %1395 = vmatprep.subr.mxu0 %v476
    %1396 = vmatpush1.msra.mxu0 %v475
    %1397 = vmatprep.subr.mxu0 %v472
    %1398 = vmatpush1.msra.mxu0 %v471
    %1399 = vmatprep.subr.mxu0 %v468
    %1400 = vmatpush1.msra.mxu0 %v467
    %1401 = vmatprep.subr.mxu0 %v464
    %1402 = vmatpush1.msra.mxu0 %v463
    %1403 = vmatprep.subr.mxu0 %v460
    %1404 = vmatpush1.msra.mxu0 %v459
    %1405 = vmatprep.subr.mxu0 %v456
    %1406 = vmatpush1.msra.mxu0 %v455
    %1407 = vmatprep.subr.mxu0 %v452
    %1408 = vmatpush1.msra.mxu0 %v451
    %1409 = vmatprep.subr.mxu0 %v448
    %1410 = vmatpush1.msra.mxu0 %v447
    %1411 = vmatprep.subr.mxu0 %v444
    %1412 = vmatpush1.msra.mxu0 %v443
    %1413 = vmatprep.subr.mxu0 %v440
    %1414 = vmatpush1.msra.mxu0 %v439
    %1415 = vmatprep.subr.mxu0 %v436
    %1416 = vmatpush1.msra.mxu0 %v435
    %1417 = vmatprep.subr.mxu0 %v432
    %1418 = vmatpush1.msra.mxu0 %v431
    %1419 = vmatprep.subr.mxu0 0.0
    %1420 = vmatpush2.msra.mxu0 0.0
    %1421 = vmatprep.subr.mxu0 0.0
    %1422 = vmatpush2.msra.mxu0 0.0
    %1423 = vmatprep.subr.mxu0 0.0
    %1424 = vmatpush2.msra.mxu0 0.0
    %1425 = vmatprep.subr.mxu0 0.0
    %1426 = vmatpush2.msra.mxu0 0.0
    %1427 = vmatprep.subr.mxu0 0.0
    %1428 = vmatpush2.msra.mxu0 0.0
    %1429 = vmatprep.subr.mxu0 0.0
    %1430 = vmatpush2.msra.mxu0 0.0
    %1431 = vmatprep.subr.mxu0 0.0
    %1432 = vmatpush2.msra.mxu0 0.0
    %1433 = vmatprep.subr.mxu0 0.0
    %1434 = vmatpush2.msra.mxu0 0.0
    %1435 = vmatprep.subr.mxu0 0.0
    %1436 = vmatpush2.msra.mxu0 0.0
    %1437 = vmatprep.subr.mxu0 0.0
    %1438 = vmatpush2.msra.mxu0 0.0
    %1439 = vmatprep.subr.mxu0 0.0
    %1440 = vmatpush2.msra.mxu0 0.0
    %1441 = vmatprep.subr.mxu0 0.0
    %1442 = vmatpush2.msra.mxu0 0.0
    %1443 = vmatprep.subr.mxu0 0.0
    %1444 = vmatpush2.msra.mxu0 0.0
    %1445 = vmatprep.subr.mxu0 0.0
    %1446 = vmatpush2.msra.mxu0 0.0
    %1447 = vmatprep.subr.mxu0 0.0
    %1448 = vmatpush2.msra.mxu0 0.0
    %1449 = vmatprep.subr.mxu0 0.0
    %1450 = vmatpush2.msra.mxu0 0.0
    %1451 = vmatprep.mubr.f32.mxu0 0.0
    %1452 = vmatmul.mubr.f32.gmra.mxu0 %v1379
    %v1453 = vpop.f32.mrf.mxu0
    %v1454 = vadd.f32 0.0, %v1453
    %v1455 = vpop.f32.mrf.mxu0
    %v1456 = vadd.f32 0.0, %v1455
    %1457 = vdwg.mxu0
    %1458 = vmatprep.subr.mxu0 %v494
    %1459 = vmatpush1.msra.mxu0 %v493
    %1460 = vmatprep.subr.mxu0 %v490
    %1461 = vmatpush1.msra.mxu0 %v489
    %1462 = vmatprep.subr.mxu0 %v486
    %1463 = vmatpush1.msra.mxu0 %v485
    %1464 = vmatprep.subr.mxu0 %v482
    %1465 = vmatpush1.msra.mxu0 %v481
    %1466 = vmatprep.subr.mxu0 %v478
    %1467 = vmatpush1.msra.mxu0 %v477
    %1468 = vmatprep.subr.mxu0 %v474
    %1469 = vmatpush1.msra.mxu0 %v473
    %1470 = vmatprep.subr.mxu0 %v470
    %1471 = vmatpush1.msra.mxu0 %v469
    %1472 = vmatprep.subr.mxu0 %v466
    %1473 = vmatpush1.msra.mxu0 %v465
    %1474 = vmatprep.subr.mxu0 %v462
    %1475 = vmatpush1.msra.mxu0 %v461
    %1476 = vmatprep.subr.mxu0 %v458
    %1477 = vmatpush1.msra.mxu0 %v457
    %1478 = vmatprep.subr.mxu0 %v454
    %1479 = vmatpush1.msra.mxu0 %v453
    %1480 = vmatprep.subr.mxu0 %v450
    %1481 = vmatpush1.msra.mxu0 %v449
    %1482 = vmatprep.subr.mxu0 %v446
    %1483 = vmatpush1.msra.mxu0 %v445
    %1484 = vmatprep.subr.mxu0 %v442
    %1485 = vmatpush1.msra.mxu0 %v441
    %1486 = vmatprep.subr.mxu0 %v438
    %1487 = vmatpush1.msra.mxu0 %v437
    %1488 = vmatprep.subr.mxu0 %v434
    %1489 = vmatpush1.msra.mxu0 %v433
    %1490 = vmatprep.subr.mxu0 0.0
    %1491 = vmatpush2.msra.mxu0 0.0
    %1492 = vmatprep.subr.mxu0 0.0
    %1493 = vmatpush2.msra.mxu0 0.0
    %1494 = vmatprep.subr.mxu0 0.0
    %1495 = vmatpush2.msra.mxu0 0.0
    %1496 = vmatprep.subr.mxu0 0.0
    %1497 = vmatpush2.msra.mxu0 0.0
    %1498 = vmatprep.subr.mxu0 0.0
    %1499 = vmatpush2.msra.mxu0 0.0
    %1500 = vmatprep.subr.mxu0 0.0
    %1501 = vmatpush2.msra.mxu0 0.0
    %1502 = vmatprep.subr.mxu0 0.0
    %1503 = vmatpush2.msra.mxu0 0.0
    %1504 = vmatprep.subr.mxu0 0.0
    %1505 = vmatpush2.msra.mxu0 0.0
    %1506 = vmatprep.subr.mxu0 0.0
    %1507 = vmatpush2.msra.mxu0 0.0
    %1508 = vmatprep.subr.mxu0 0.0
    %1509 = vmatpush2.msra.mxu0 0.0
    %1510 = vmatprep.subr.mxu0 0.0
    %1511 = vmatpush2.msra.mxu0 0.0
    %1512 = vmatprep.subr.mxu0 0.0
    %1513 = vmatpush2.msra.mxu0 0.0
    %1514 = vmatprep.subr.mxu0 0.0
    %1515 = vmatpush2.msra.mxu0 0.0
    %1516 = vmatprep.subr.mxu0 0.0
    %1517 = vmatpush2.msra.mxu0 0.0
    %1518 = vmatprep.subr.mxu0 0.0
    %1519 = vmatpush2.msra.mxu0 0.0
    %1520 = vmatprep.subr.mxu0 0.0
    %1521 = vmatpush2.msra.mxu0 0.0
    %1522 = vmatprep.mubr.f32.mxu0 0.0
    %1523 = vmatmul.mubr.f32.gmra.mxu0 %v1379
    %v1524 = vpop.f32.mrf.mxu0
    %v1525 = vadd.f32 0.0, %v1524
    %v1526 = vpop.f32.mrf.mxu0
    %v1527 = vadd.f32 0.0, %v1526
    %1528 = vdwg.mxu0
    %v1529 = vadd.f32 %v1383, %v1454
    %v1530 = vadd.f32 %v1384, %v1456
    %v1531 = vadd.f32 %v1385, %v1525
    %v1532 = vadd.f32 %v1386, %v1527
    %v1533 = vxor.u32 %v1529, 2147483648
    %v1534 = vmul.f32 %v1533, 1.442695
    %v1535 = vpow.pop %v1534
    %v1536 = vadd.f32 %v1535, 1.0
    %v1537 = vrcp.pop %v1536
    %v1538 = vmul.f32 1.0, %v1537
    %v1539 = vxor.u32 %v1530, 2147483648
    %v1540 = vmul.f32 %v1539, 1.442695
    %v1541 = vpow.pop %v1540
    %v1542 = vadd.f32 %v1541, 1.0
    %v1543 = vrcp.pop %v1542
    %v1544 = vmul.f32 1.0, %v1543
    %v1545 = vtanh.pop %v1531
    %v1546 = vxor.u32 %v1532, 2147483648
    %v1547 = vmul.f32 %v1546, 1.442695
    %v1548 = vpow.pop %v1547
    %v1549 = vadd.f32 %v1548, 1.0
    %v1550 = vrcp.pop %v1549
    %v1551 = vmul.f32 1.0, %v1550
    %v1552 = vmul.f32 %v1544, %v1377
    %v1553 = vmul.f32 %v1538, %v1545
    %v1554 = vadd.f32 %v1552, %v1553
    %v1555 = vtanh.pop %v1554
    %v1556 = vmul.f32 %v1551, %v1555
    %s1557 = smul.u32 6, 4
    %s1558 = smul.addr %s1557, 8
    %s1559 = scalar_lea.vmem [#allocation2], %s1558
    %v1560 = vld [vmem:[%s1559] sm:$0xff]
    %v1561 = vld [vmem:[%s1559 + $0x8] sm:$0xff]
    %v1562 = vld [vmem:[%s1559 + $0x10] sm:$0xff]
    %v1563 = vld [vmem:[%s1559 + $0x18] sm:$0xff]
    %1564 = vmatprep.subr.mxu0 %v492
    %1565 = vmatpush1.msra.mxu0 %v491
    %1566 = vmatprep.subr.mxu0 %v488
    %1567 = vmatpush1.msra.mxu0 %v487
    %1568 = vmatprep.subr.mxu0 %v484
    %1569 = vmatpush1.msra.mxu0 %v483
    %1570 = vmatprep.subr.mxu0 %v480
    %1571 = vmatpush1.msra.mxu0 %v479
    %1572 = vmatprep.subr.mxu0 %v476
    %1573 = vmatpush1.msra.mxu0 %v475
    %1574 = vmatprep.subr.mxu0 %v472
    %1575 = vmatpush1.msra.mxu0 %v471
    %1576 = vmatprep.subr.mxu0 %v468
    %1577 = vmatpush1.msra.mxu0 %v467
    %1578 = vmatprep.subr.mxu0 %v464
    %1579 = vmatpush1.msra.mxu0 %v463
    %1580 = vmatprep.subr.mxu0 %v460
    %1581 = vmatpush1.msra.mxu0 %v459
    %1582 = vmatprep.subr.mxu0 %v456
    %1583 = vmatpush1.msra.mxu0 %v455
    %1584 = vmatprep.subr.mxu0 %v452
    %1585 = vmatpush1.msra.mxu0 %v451
    %1586 = vmatprep.subr.mxu0 %v448
    %1587 = vmatpush1.msra.mxu0 %v447
    %1588 = vmatprep.subr.mxu0 %v444
    %1589 = vmatpush1.msra.mxu0 %v443
    %1590 = vmatprep.subr.mxu0 %v440
    %1591 = vmatpush1.msra.mxu0 %v439
    %1592 = vmatprep.subr.mxu0 %v436
    %1593 = vmatpush1.msra.mxu0 %v435
    %1594 = vmatprep.subr.mxu0 %v432
    %1595 = vmatpush1.msra.mxu0 %v431
    %1596 = vmatprep.subr.mxu0 0.0
    %1597 = vmatpush2.msra.mxu0 0.0
    %1598 = vmatprep.subr.mxu0 0.0
    %1599 = vmatpush2.msra.mxu0 0.0
    %1600 = vmatprep.subr.mxu0 0.0
    %1601 = vmatpush2.msra.mxu0 0.0
    %1602 = vmatprep.subr.mxu0 0.0
    %1603 = vmatpush2.msra.mxu0 0.0
    %1604 = vmatprep.subr.mxu0 0.0
    %1605 = vmatpush2.msra.mxu0 0.0
    %1606 = vmatprep.subr.mxu0 0.0
    %1607 = vmatpush2.msra.mxu0 0.0
    %1608 = vmatprep.subr.mxu0 0.0
    %1609 = vmatpush2.msra.mxu0 0.0
    %1610 = vmatprep.subr.mxu0 0.0
    %1611 = vmatpush2.msra.mxu0 0.0
    %1612 = vmatprep.subr.mxu0 0.0
    %1613 = vmatpush2.msra.mxu0 0.0
    %1614 = vmatprep.subr.mxu0 0.0
    %1615 = vmatpush2.msra.mxu0 0.0
    %1616 = vmatprep.subr.mxu0 0.0
    %1617 = vmatpush2.msra.mxu0 0.0
    %1618 = vmatprep.subr.mxu0 0.0
    %1619 = vmatpush2.msra.mxu0 0.0
    %1620 = vmatprep.subr.mxu0 0.0
    %1621 = vmatpush2.msra.mxu0 0.0
    %1622 = vmatprep.subr.mxu0 0.0
    %1623 = vmatpush2.msra.mxu0 0.0
    %1624 = vmatprep.subr.mxu0 0.0
    %1625 = vmatpush2.msra.mxu0 0.0
    %1626 = vmatprep.subr.mxu0 0.0
    %1627 = vmatpush2.msra.mxu0 0.0
    %1628 = vmatprep.mubr.f32.mxu0 0.0
    %1629 = vmatmul.mubr.f32.gmra.mxu0 %v1556
    %v1630 = vpop.f32.mrf.mxu0
    %v1631 = vadd.f32 0.0, %v1630
    %v1632 = vpop.f32.mrf.mxu0
    %v1633 = vadd.f32 0.0, %v1632
    %1634 = vdwg.mxu0
    %1635 = vmatprep.subr.mxu0 %v494
    %1636 = vmatpush1.msra.mxu0 %v493
    %1637 = vmatprep.subr.mxu0 %v490
    %1638 = vmatpush1.msra.mxu0 %v489
    %1639 = vmatprep.subr.mxu0 %v486
    %1640 = vmatpush1.msra.mxu0 %v485
    %1641 = vmatprep.subr.mxu0 %v482
    %1642 = vmatpush1.msra.mxu0 %v481
    %1643 = vmatprep.subr.mxu0 %v478
    %1644 = vmatpush1.msra.mxu0 %v477
    %1645 = vmatprep.subr.mxu0 %v474
    %1646 = vmatpush1.msra.mxu0 %v473
    %1647 = vmatprep.subr.mxu0 %v470
    %1648 = vmatpush1.msra.mxu0 %v469
    %1649 = vmatprep.subr.mxu0 %v466
    %1650 = vmatpush1.msra.mxu0 %v465
    %1651 = vmatprep.subr.mxu0 %v462
    %1652 = vmatpush1.msra.mxu0 %v461
    %1653 = vmatprep.subr.mxu0 %v458
    %1654 = vmatpush1.msra.mxu0 %v457
    %1655 = vmatprep.subr.mxu0 %v454
    %1656 = vmatpush1.msra.mxu0 %v453
    %1657 = vmatprep.subr.mxu0 %v450
    %1658 = vmatpush1.msra.mxu0 %v449
    %1659 = vmatprep.subr.mxu0 %v446
    %1660 = vmatpush1.msra.mxu0 %v445
    %1661 = vmatprep.subr.mxu0 %v442
    %1662 = vmatpush1.msra.mxu0 %v441
    %1663 = vmatprep.subr.mxu0 %v438
    %1664 = vmatpush1.msra.mxu0 %v437
    %1665 = vmatprep.subr.mxu0 %v434
    %1666 = vmatpush1.msra.mxu0 %v433
    %1667 = vmatprep.subr.mxu0 0.0
    %1668 = vmatpush2.msra.mxu0 0.0
    %1669 = vmatprep.subr.mxu0 0.0
    %1670 = vmatpush2.msra.mxu0 0.0
    %1671 = vmatprep.subr.mxu0 0.0
    %1672 = vmatpush2.msra.mxu0 0.0
    %1673 = vmatprep.subr.mxu0 0.0
    %1674 = vmatpush2.msra.mxu0 0.0
    %1675 = vmatprep.subr.mxu0 0.0
    %1676 = vmatpush2.msra.mxu0 0.0
    %1677 = vmatprep.subr.mxu0 0.0
    %1678 = vmatpush2.msra.mxu0 0.0
    %1679 = vmatprep.subr.mxu0 0.0
    %1680 = vmatpush2.msra.mxu0 0.0
    %1681 = vmatprep.subr.mxu0 0.0
    %1682 = vmatpush2.msra.mxu0 0.0
    %1683 = vmatprep.subr.mxu0 0.0
    %1684 = vmatpush2.msra.mxu0 0.0
    %1685 = vmatprep.subr.mxu0 0.0
    %1686 = vmatpush2.msra.mxu0 0.0
    %1687 = vmatprep.subr.mxu0 0.0
    %1688 = vmatpush2.msra.mxu0 0.0
    %1689 = vmatprep.subr.mxu0 0.0
    %1690 = vmatpush2.msra.mxu0 0.0
    %1691 = vmatprep.subr.mxu0 0.0
    %1692 = vmatpush2.msra.mxu0 0.0
    %1693 = vmatprep.subr.mxu0 0.0
    %1694 = vmatpush2.msra.mxu0 0.0
    %1695 = vmatprep.subr.mxu0 0.0
    %1696 = vmatpush2.msra.mxu0 0.0
    %1697 = vmatprep.subr.mxu0 0.0
    %1698 = vmatpush2.msra.mxu0 0.0
    %1699 = vmatprep.mubr.f32.mxu0 0.0
    %1700 = vmatmul.mubr.f32.gmra.mxu0 %v1556
    %v1701 = vpop.f32.mrf.mxu0
    %v1702 = vadd.f32 0.0, %v1701
    %v1703 = vpop.f32.mrf.mxu0
    %v1704 = vadd.f32 0.0, %v1703
    %1705 = vdwg.mxu0
    %v1706 = vadd.f32 %v1560, %v1631
    %v1707 = vadd.f32 %v1561, %v1633
    %v1708 = vadd.f32 %v1562, %v1702
    %v1709 = vadd.f32 %v1563, %v1704
    %v1710 = vxor.u32 %v1706, 2147483648
    %v1711 = vmul.f32 %v1710, 1.442695
    %v1712 = vpow.pop %v1711
    %v1713 = vadd.f32 %v1712, 1.0
    %v1714 = vrcp.pop %v1713
    %v1715 = vmul.f32 1.0, %v1714
    %v1716 = vxor.u32 %v1707, 2147483648
    %v1717 = vmul.f32 %v1716, 1.442695
    %v1718 = vpow.pop %v1717
    %v1719 = vadd.f32 %v1718, 1.0
    %v1720 = vrcp.pop %v1719
    %v1721 = vmul.f32 1.0, %v1720
    %v1722 = vtanh.pop %v1708
    %v1723 = vxor.u32 %v1709, 2147483648
    %v1724 = vmul.f32 %v1723, 1.442695
    %v1725 = vpow.pop %v1724
    %v1726 = vadd.f32 %v1725, 1.0
    %v1727 = vrcp.pop %v1726
    %v1728 = vmul.f32 1.0, %v1727
    %v1729 = vmul.f32 %v1721, %v1554
    %v1730 = vmul.f32 %v1715, %v1722
    %v1731 = vadd.f32 %v1729, %v1730
    %v1732 = vtanh.pop %v1731
    %v1733 = vmul.f32 %v1728, %v1732
    %s1734 = smul.u32 7, 4
    %s1735 = smul.addr %s1734, 8
    %s1736 = scalar_lea.vmem [#allocation2], %s1735
    %v1737 = vld [vmem:[%s1736] sm:$0xff]
    %v1738 = vld [vmem:[%s1736 + $0x8] sm:$0xff]
    %v1739 = vld [vmem:[%s1736 + $0x10] sm:$0xff]
    %v1740 = vld [vmem:[%s1736 + $0x18] sm:$0xff]
    %1741 = vmatprep.subr.mxu0 %v492
    %1742 = vmatpush1.msra.mxu0 %v491
    %1743 = vmatprep.subr.mxu0 %v488
    %1744 = vmatpush1.msra.mxu0 %v487
    %1745 = vmatprep.subr.mxu0 %v484
    %1746 = vmatpush1.msra.mxu0 %v483
    %1747 = vmatprep.subr.mxu0 %v480
    %1748 = vmatpush1.msra.mxu0 %v479
    %1749 = vmatprep.subr.mxu0 %v476
    %1750 = vmatpush1.msra.mxu0 %v475
    %1751 = vmatprep.subr.mxu0 %v472
    %1752 = vmatpush1.msra.mxu0 %v471
    %1753 = vmatprep.subr.mxu0 %v468
    %1754 = vmatpush1.msra.mxu0 %v467
    %1755 = vmatprep.subr.mxu0 %v464
    %1756 = vmatpush1.msra.mxu0 %v463
    %1757 = vmatprep.subr.mxu0 %v460
    %1758 = vmatpush1.msra.mxu0 %v459
    %1759 = vmatprep.subr.mxu0 %v456
    %1760 = vmatpush1.msra.mxu0 %v455
    %1761 = vmatprep.subr.mxu0 %v452
    %1762 = vmatpush1.msra.mxu0 %v451
    %1763 = vmatprep.subr.mxu0 %v448
    %1764 = vmatpush1.msra.mxu0 %v447
    %1765 = vmatprep.subr.mxu0 %v444
    %1766 = vmatpush1.msra.mxu0 %v443
    %1767 = vmatprep.subr.mxu0 %v440
    %1768 = vmatpush1.msra.mxu0 %v439
    %1769 = vmatprep.subr.mxu0 %v436
    %1770 = vmatpush1.msra.mxu0 %v435
    %1771 = vmatprep.subr.mxu0 %v432
    %1772 = vmatpush1.msra.mxu0 %v431
    %1773 = vmatprep.subr.mxu0 0.0
    %1774 = vmatpush2.msra.mxu0 0.0
    %1775 = vmatprep.subr.mxu0 0.0
    %1776 = vmatpush2.msra.mxu0 0.0
    %1777 = vmatprep.subr.mxu0 0.0
    %1778 = vmatpush2.msra.mxu0 0.0
    %1779 = vmatprep.subr.mxu0 0.0
    %1780 = vmatpush2.msra.mxu0 0.0
    %1781 = vmatprep.subr.mxu0 0.0
    %1782 = vmatpush2.msra.mxu0 0.0
    %1783 = vmatprep.subr.mxu0 0.0
    %1784 = vmatpush2.msra.mxu0 0.0
    %1785 = vmatprep.subr.mxu0 0.0
    %1786 = vmatpush2.msra.mxu0 0.0
    %1787 = vmatprep.subr.mxu0 0.0
    %1788 = vmatpush2.msra.mxu0 0.0
    %1789 = vmatprep.subr.mxu0 0.0
    %1790 = vmatpush2.msra.mxu0 0.0
    %1791 = vmatprep.subr.mxu0 0.0
    %1792 = vmatpush2.msra.mxu0 0.0
    %1793 = vmatprep.subr.mxu0 0.0
    %1794 = vmatpush2.msra.mxu0 0.0
    %1795 = vmatprep.subr.mxu0 0.0
    %1796 = vmatpush2.msra.mxu0 0.0
    %1797 = vmatprep.subr.mxu0 0.0
    %1798 = vmatpush2.msra.mxu0 0.0
    %1799 = vmatprep.subr.mxu0 0.0
    %1800 = vmatpush2.msra.mxu0 0.0
    %1801 = vmatprep.subr.mxu0 0.0
    %1802 = vmatpush2.msra.mxu0 0.0
    %1803 = vmatprep.subr.mxu0 0.0
    %1804 = vmatpush2.msra.mxu0 0.0
    %1805 = vmatprep.mubr.f32.mxu0 0.0
    %1806 = vmatmul.mubr.f32.gmra.mxu0 %v1733
    %v1807 = vpop.f32.mrf.mxu0
    %v1808 = vadd.f32 0.0, %v1807
    %v1809 = vpop.f32.mrf.mxu0
    %v1810 = vadd.f32 0.0, %v1809
    %1811 = vdwg.mxu0
    %1812 = vmatprep.subr.mxu0 %v494
    %1813 = vmatpush1.msra.mxu0 %v493
    %1814 = vmatprep.subr.mxu0 %v490
    %1815 = vmatpush1.msra.mxu0 %v489
    %1816 = vmatprep.subr.mxu0 %v486
    %1817 = vmatpush1.msra.mxu0 %v485
    %1818 = vmatprep.subr.mxu0 %v482
    %1819 = vmatpush1.msra.mxu0 %v481
    %1820 = vmatprep.subr.mxu0 %v478
    %1821 = vmatpush1.msra.mxu0 %v477
    %1822 = vmatprep.subr.mxu0 %v474
    %1823 = vmatpush1.msra.mxu0 %v473
    %1824 = vmatprep.subr.mxu0 %v470
    %1825 = vmatpush1.msra.mxu0 %v469
    %1826 = vmatprep.subr.mxu0 %v466
    %1827 = vmatpush1.msra.mxu0 %v465
    %1828 = vmatprep.subr.mxu0 %v462
    %1829 = vmatpush1.msra.mxu0 %v461
    %1830 = vmatprep.subr.mxu0 %v458
    %1831 = vmatpush1.msra.mxu0 %v457
    %1832 = vmatprep.subr.mxu0 %v454
    %1833 = vmatpush1.msra.mxu0 %v453
    %1834 = vmatprep.subr.mxu0 %v450
    %1835 = vmatpush1.msra.mxu0 %v449
    %1836 = vmatprep.subr.mxu0 %v446
    %1837 = vmatpush1.msra.mxu0 %v445
    %1838 = vmatprep.subr.mxu0 %v442
    %1839 = vmatpush1.msra.mxu0 %v441
    %1840 = vmatprep.subr.mxu0 %v438
    %1841 = vmatpush1.msra.mxu0 %v437
    %1842 = vmatprep.subr.mxu0 %v434
    %1843 = vmatpush1.msra.mxu0 %v433
    %1844 = vmatprep.subr.mxu0 0.0
    %1845 = vmatpush2.msra.mxu0 0.0
    %1846 = vmatprep.subr.mxu0 0.0
    %1847 = vmatpush2.msra.mxu0 0.0
    %1848 = vmatprep.subr.mxu0 0.0
    %1849 = vmatpush2.msra.mxu0 0.0
    %1850 = vmatprep.subr.mxu0 0.0
    %1851 = vmatpush2.msra.mxu0 0.0
    %1852 = vmatprep.subr.mxu0 0.0
    %1853 = vmatpush2.msra.mxu0 0.0
    %1854 = vmatprep.subr.mxu0 0.0
    %1855 = vmatpush2.msra.mxu0 0.0
    %1856 = vmatprep.subr.mxu0 0.0
    %1857 = vmatpush2.msra.mxu0 0.0
    %1858 = vmatprep.subr.mxu0 0.0
    %1859 = vmatpush2.msra.mxu0 0.0
    %1860 = vmatprep.subr.mxu0 0.0
    %1861 = vmatpush2.msra.mxu0 0.0
    %1862 = vmatprep.subr.mxu0 0.0
    %1863 = vmatpush2.msra.mxu0 0.0
    %1864 = vmatprep.subr.mxu0 0.0
    %1865 = vmatpush2.msra.mxu0 0.0
    %1866 = vmatprep.subr.mxu0 0.0
    %1867 = vmatpush2.msra.mxu0 0.0
    %1868 = vmatprep.subr.mxu0 0.0
    %1869 = vmatpush2.msra.mxu0 0.0
    %1870 = vmatprep.subr.mxu0 0.0
    %1871 = vmatpush2.msra.mxu0 0.0
    %1872 = vmatprep.subr.mxu0 0.0
    %1873 = vmatpush2.msra.mxu0 0.0
    %1874 = vmatprep.subr.mxu0 0.0
    %1875 = vmatpush2.msra.mxu0 0.0
    %1876 = vmatprep.mubr.f32.mxu0 0.0
    %1877 = vmatmul.mubr.f32.gmra.mxu0 %v1733
    %v1878 = vpop.f32.mrf.mxu0
    %v1879 = vadd.f32 0.0, %v1878
    %v1880 = vpop.f32.mrf.mxu0
    %v1881 = vadd.f32 0.0, %v1880
    %1882 = vdwg.mxu0
    %v1883 = vadd.f32 %v1737, %v1808
    %v1884 = vadd.f32 %v1738, %v1810
    %v1885 = vadd.f32 %v1739, %v1879
    %v1886 = vadd.f32 %v1740, %v1881
    %v1887 = vxor.u32 %v1883, 2147483648
    %v1888 = vmul.f32 %v1887, 1.442695
    %v1889 = vpow.pop %v1888
    %v1890 = vadd.f32 %v1889, 1.0
    %v1891 = vrcp.pop %v1890
    %v1892 = vmul.f32 1.0, %v1891
    %v1893 = vxor.u32 %v1884, 2147483648
    %v1894 = vmul.f32 %v1893, 1.442695
    %v1895 = vpow.pop %v1894
    %v1896 = vadd.f32 %v1895, 1.0
    %v1897 = vrcp.pop %v1896
    %v1898 = vmul.f32 1.0, %v1897
    %v1899 = vtanh.pop %v1885
    %v1900 = vxor.u32 %v1886, 2147483648
    %v1901 = vmul.f32 %v1900, 1.442695
    %v1902 = vpow.pop %v1901
    %v1903 = vadd.f32 %v1902, 1.0
    %v1904 = vrcp.pop %v1903
    %v1905 = vmul.f32 1.0, %v1904
    %v1906 = vmul.f32 %v1898, %v1731
    %v1907 = vmul.f32 %v1892, %v1899
    %v1908 = vadd.f32 %v1906, %v1907
    %v1909 = vtanh.pop %v1908
    %v1910 = vmul.f32 %v1905, %v1909
    %v1911 = vld [vmem:[#allocation9] sm:$0xff]
    %v1912 = vld [vmem:[#allocation9 + $0x8] sm:$0xff]
    %v1913 = vld [vmem:[#allocation9 + $0x10] sm:$0xff]
    %v1914 = vld [vmem:[#allocation9 + $0x18] sm:$0xff]
    %v1915 = vld [vmem:[#allocation9 + $0x20] sm:$0xff]
    %v1916 = vld [vmem:[#allocation9 + $0x28] sm:$0xff]
    %v1917 = vld [vmem:[#allocation9 + $0x30] sm:$0xff]
    %v1918 = vld [vmem:[#allocation9 + $0x38] sm:$0xff]
    %v1919 = vld [vmem:[#allocation9 + $0x40] sm:$0xff]
    %v1920 = vld [vmem:[#allocation9 + $0x48] sm:$0xff]
    %v1921 = vld [vmem:[#allocation9 + $0x50] sm:$0xff]
    %v1922 = vld [vmem:[#allocation9 + $0x58] sm:$0xff]
    %v1923 = vld [vmem:[#allocation9 + $0x60] sm:$0xff]
    %v1924 = vld [vmem:[#allocation9 + $0x68] sm:$0xff]
    %v1925 = vld [vmem:[#allocation9 + $0x70] sm:$0xff]
    %v1926 = vld [vmem:[#allocation9 + $0x78] sm:$0xff]
    %v1927 = vld [vmem:[%s5] sm:$0x1]
    %v1929 = vlaneseq
    %v1930 = vshrl.u32 %v1929, 7
    %v1931 = vsub.s32 0, %v1930
    %v1932 = vrot.slane %v1927, %v1931
    %1934 = vmatprep.subr.mxu0 0.0
    %1935 = vmatpush1.msra.mxu0 %v1926
    %1936 = vmatprep.subr.mxu0 0.0
    %1937 = vmatpush1.msra.mxu0 %v1925
    %1938 = vmatprep.subr.mxu0 0.0
    %1939 = vmatpush1.msra.mxu0 %v1924
    %1940 = vmatprep.subr.mxu0 0.0
    %1941 = vmatpush1.msra.mxu0 %v1923
    %1942 = vmatprep.subr.mxu0 0.0
    %1943 = vmatpush1.msra.mxu0 %v1922
    %1944 = vmatprep.subr.mxu0 0.0
    %1945 = vmatpush1.msra.mxu0 %v1921
    %1946 = vmatprep.subr.mxu0 0.0
    %1947 = vmatpush1.msra.mxu0 %v1920
    %1948 = vmatprep.subr.mxu0 0.0
    %1949 = vmatpush1.msra.mxu0 %v1919
    %1950 = vmatprep.subr.mxu0 0.0
    %1951 = vmatpush1.msra.mxu0 %v1918
    %1952 = vmatprep.subr.mxu0 0.0
    %1953 = vmatpush1.msra.mxu0 %v1917
    %1954 = vmatprep.subr.mxu0 0.0
    %1955 = vmatpush1.msra.mxu0 %v1916
    %1956 = vmatprep.subr.mxu0 0.0
    %1957 = vmatpush1.msra.mxu0 %v1915
    %1958 = vmatprep.subr.mxu0 0.0
    %1959 = vmatpush1.msra.mxu0 %v1914
    %1960 = vmatprep.subr.mxu0 0.0
    %1961 = vmatpush1.msra.mxu0 %v1913
    %1962 = vmatprep.subr.mxu0 0.0
    %1963 = vmatpush1.msra.mxu0 %v1912
    %1964 = vmatprep.subr.mxu0 0.0
    %1965 = vmatpush1.msra.mxu0 %v1911
    %1966 = vmatprep.subr.mxu0 0.0
    %1967 = vmatpush2.msra.mxu0 0.0
    %1968 = vmatprep.subr.mxu0 0.0
    %1969 = vmatpush2.msra.mxu0 0.0
    %1970 = vmatprep.subr.mxu0 0.0
    %1971 = vmatpush2.msra.mxu0 0.0
    %1972 = vmatprep.subr.mxu0 0.0
    %1973 = vmatpush2.msra.mxu0 0.0
    %1974 = vmatprep.subr.mxu0 0.0
    %1975 = vmatpush2.msra.mxu0 0.0
    %1976 = vmatprep.subr.mxu0 0.0
    %1977 = vmatpush2.msra.mxu0 0.0
    %1978 = vmatprep.subr.mxu0 0.0
    %1979 = vmatpush2.msra.mxu0 0.0
    %1980 = vmatprep.subr.mxu0 0.0
    %1981 = vmatpush2.msra.mxu0 0.0
    %1982 = vmatprep.subr.mxu0 0.0
    %1983 = vmatpush2.msra.mxu0 0.0
    %1984 = vmatprep.subr.mxu0 0.0
    %1985 = vmatpush2.msra.mxu0 0.0
    %1986 = vmatprep.subr.mxu0 0.0
    %1987 = vmatpush2.msra.mxu0 0.0
    %1988 = vmatprep.subr.mxu0 0.0
    %1989 = vmatpush2.msra.mxu0 0.0
    %1990 = vmatprep.subr.mxu0 0.0
    %1991 = vmatpush2.msra.mxu0 0.0
    %1992 = vmatprep.subr.mxu0 0.0
    %1993 = vmatpush2.msra.mxu0 0.0
    %1994 = vmatprep.subr.mxu0 0.0
    %1995 = vmatpush2.msra.mxu0 0.0
    %1996 = vmatprep.subr.mxu0 0.0
    %1997 = vmatpush2.msra.mxu0 0.0
    %1998 = vmatprep.mubr.f32.mxu0 0.0
    %1999 = vmatmul.mubr.f32.gmra.mxu0 %v1910
    %v2000 = vpop.f32.mrf.mxu0
    %v2001 = vadd.f32 %v1932, %v2000
    %v2002 = vpop.f32.mrf.mxu0
    %2003 = vdwg.mxu0
    %2004 = vst [vmem:[#allocation11] sm:$0xff] %v2001
    // Predicated region
    $region42: #{tpu_custom_call.1} parent=1 // pred_check
      _
    $region43: #{tpu_custom_call.1} parent=1 // pred_check_branch
      %2006 = sbr.rel (0) target = $region45
    $region44: #{tpu_custom_call.1} parent=1 // pred_region
      %s2008 = ssub.s32 128, 128
      %2009 = vsyncadd [#allocation5], %s2008
      %s2011 = sshll.u32 [#allocation11], 4
      %s2012 = int_to_ptr.vmem [resolvable:$true] %s2011
      %2014 = dma.vmem_to_hbm [thread:$0]  %s2012, 128, %s6, [#allocation5]
    $region45: #{tpu_custom_call.1} parent=1 // pred_fallthru
      _
    // Predicated region
    $region46: #{tpu_custom_call.1} parent=1 // pred_check
      _
    $region47: #{tpu_custom_call.1} parent=1 // pred_check_branch
      %2016 = sbr.rel (0) target = $region49
    $region48: #{tpu_custom_call.1} parent=1 // pred_region
      %2017 = dma.done [#allocation5], 128
    $region49: #{tpu_custom_call.1} parent=1 // pred_fallthru
      _
    %2018 = vsyncpa [#allocation4], 1
    %2019 = vsyncpa [#allocation7], 1
    %2020 = vsyncpa [#allocation10], 1
    %2021 = vsyncpa [#allocation5], 1

</llo_original>
